<compile_context>
chip_gen: v7x
topology: tpu7x:2x2x1
jax: 0.10.0
libtpu: 0.0.40
codegen_flags: <defaults>
</compile_context>

<pallas_src>
import jax
import jax.numpy as jnp
from jax.experimental import pallas as pl
from jax.experimental.pallas import tpu as pltpu


def _round_up(x, m):
    return ((x + m - 1) // m) * m


def _vmem_budget():
    """(working-set budget, Mosaic vmem_limit_bytes) sized per TPU generation."""
    try:
        cap = int(pltpu.get_tpu_info().vmem_capacity_bytes)
    except Exception:
        cap = 64 * 1024 * 1024          # v7x-safe fallback (smallest VMEM of v5e/v6e/v7x)
    return (cap * 3) // 5, (cap * 3) // 4   # ~60% for the estimate, ~75% as the limit


def _choose_row_tile(H, W, Kp, Coutp, in_bytes, budget_bytes):
    """Largest row tile whose working set fits the budget; prefer divisors of H."""
    def est(th):
        return (2 * (th + 2) * W * Kp * in_bytes   # double-buffered input row window
                + 2 * th * W * Coutp * 4           # output block (f32), double-buffered
                + th * W * Coutp * 4               # live f32 accumulator value
                + 2 * 3 * Kp * Coutp * in_bytes    # folded weights (pipeline buffers)
                + 2 * Coutp * 4)                   # bias
    cap = min(H, 512)
    best = 1
    for th in range(1, cap + 1):
        if est(th) <= budget_bytes:
            best = th
        else:
            break
    # Prefer the largest divisor of H within ~80% of the best fitting tile: avoids
    # computing/writing padded rows and the extra copy implied by y[:, :H].
    for th in range(best, 0, -1):
        if H % th == 0 and 5 * th >= 4 * best:
            return th
    return best


def _conv3x3_prelu_kernel(x_hbm, w_ref, b_ref, a_ref, o_ref, xbuf, sem):
    # x_hbm : (N, Hp+2, W, Kp)   kw-folded, channel-padded input (HBM, manual DMA)
    # w_ref : (3, Kp, Coutp)     folded conv weights (VMEM, grid-invariant -> resident)
    # b_ref : (1, Coutp)         conv bias (VMEM)
    # a_ref : (1, 1)             PReLU scalar alpha (SMEM)
    # o_ref : (1, TH, W, Coutp)  conv + bias + PReLU output block (VMEM)
    # xbuf  : (2, TH+2, W, Kp)   double-buffered input row-window scratch (VMEM)
    # sem   : (2,)               DMA completion semaphores
    n = pl.program_id(0)
    t = pl.program_id(1)
    nT = pl.num_programs(1)
    TH = o_ref.shape[1]
    W = o_ref.shape[2]
    Kp = xbuf.shape[3]
    Coutp = o_ref.shape[3]
    slot = t % 2

    def window_copy(row_tile, buf_slot):
        return pltpu.make_async_copy(
            x_hbm.at[n, pl.ds(row_tile * TH, TH + 2)],
            xbuf.at[buf_slot],
            sem.at[buf_slot])

    # Prime the chain at the first row tile of every image.  The t axis is "arbitrary",
    # so all t for a given n run sequentially on one core and the chain is self-contained.
    @pl.when(t == 0)
    def _():
        window_copy(0, 0).start()

    # Prefetch the next row window while computing on the current one.
    @pl.when(t + 1 < nT)
    def _():
        window_copy(t + 1, 1 - slot).start()

    window_copy(t, slot).wait()
    xv = xbuf.at[slot]                      # (TH+2, W, Kp) view of the current window

    # 3 MXU matmuls with K = 3*Cin (padded to Kp), value-chained so the accumulator never
    # round-trips through a VMEM scratch (v7x can accumulate in the MRB).  Slices are
    # along the outer row axis only; the (TH, W) -> TH*W collapse keeps W in sublanes
    # (no relayout copies when W % 8 == 0).
    acc = jnp.dot(xv[0:TH].reshape(TH * W, Kp), w_ref[0],
                  preferred_element_type=jnp.float32)
    acc = acc + jnp.dot(xv[1:1 + TH].reshape(TH * W, Kp), w_ref[1],
                        preferred_element_type=jnp.float32)
    acc = acc + jnp.dot(xv[2:2 + TH].reshape(TH * W, Kp), w_ref[2],
                        preferred_element_type=jnp.float32)

    # Fused bias + PReLU epilogue, single store to the output block.
    acc = acc + b_ref[0][None, :]
    alpha = a_ref[0, 0]                                # scalar read from SMEM
    y = jnp.where(acc >= 0, acc, alpha * acc)          # PReLU (shared scalar alpha)
    o_ref[...] = y.reshape(1, TH, W, Coutp).astype(o_ref.dtype)


def upsample_block_forward(x_nchw, weight_oihw, bias, prelu_alpha, *,
                           row_tile=None, compute_dtype=None):
    """UpsampleBlock forward: Conv2d(3x3, s1, p1) -> PixelShuffle(2) -> PReLU.

    x_nchw      : (N, Cin, H, W)    float32
    weight_oihw : (Cout, Cin, 3, 3) float32   (PyTorch conv weight layout)
    bias        : (Cout,)           float32
    prelu_alpha : scalar            float32   (nn.PReLU default: one shared parameter)
    returns     : (N, Cout//4, 2H, 2W) float32 (NCHW, like PyTorch)
    """
    N, Cin, H, W = x_nchw.shape
    Cout = weight_oihw.shape[0]
    assert weight_oihw.shape == (Cout, Cin, 3, 3)
    assert Cout % 4 == 0, "PixelShuffle(2) needs out_channels divisible by 4"

    alpha = jnp.asarray(prelu_alpha, jnp.float32).reshape(-1)
    # PReLU applied before the shuffle is only valid for a single shared alpha.
    assert alpha.shape[0] == 1, "PReLU must use a single shared alpha (num_parameters=1)"

    K = 3 * Cin
    Kp = _round_up(K, 128)           # lane-dense input contraction dim
    Coutp = _round_up(Cout, 128)     # lane-dense output dim

    in_bytes = 2 if compute_dtype == jnp.bfloat16 else 4
    budget_bytes, vmem_limit = _vmem_budget()
    if row_tile is None:
        row_tile = _choose_row_tile(H, W, Kp, Coutp, in_bytes, budget_bytes)
    TH = max(1, min(int(row_tile), H))
    nT = -(-H // TH)                 # cdiv
    Hp = nT * TH                     # padded row count so tiles divide evenly

    # ---- wrapper-side layout prep (XLA glue) ------------------------------------
    # NCHW -> NHWC, spatial pad 1 (+ extra bottom rows so Hp tiles evenly).
    x_nhwc = jnp.transpose(x_nchw, (0, 2, 3, 1))
    x_pad = jnp.pad(x_nhwc, ((0, 0), (1, 1 + (Hp - H)), (1, 1), (0, 0)))
    # kw-fold: channel index = kw*Cin + ci  ->  (N, Hp+2, W, 3*Cin), then pad K -> Kp.
    xk = jnp.concatenate([x_pad[:, :, kw:kw + W, :] for kw in range(3)], axis=-1)
    xk = jnp.pad(xk, ((0, 0), (0, 0), (0, 0), (0, Kp - K)))

    # Weights: OIHW -> (kh, kw*Cin+ci, co), pad to (3, Kp, Coutp).
    w_hwio = jnp.transpose(weight_oihw, (2, 3, 1, 0))          # (3, 3, Cin, Cout)
    w3 = w_hwio.reshape(3, K, Cout)
    w3 = jnp.pad(w3, ((0, 0), (0, Kp - K), (0, Coutp - Cout)))
    b2 = jnp.pad(bias.astype(jnp.float32).reshape(1, Cout), ((0, 0), (0, Coutp - Cout)))
    a2 = alpha.reshape(1, 1)

    if compute_dtype is not None:
        xk = xk.astype(compute_dtype)    # bf16 MXU inputs (f32 accumulation)
        w3 = w3.astype(compute_dtype)

    # ---- Pallas conv + bias + PReLU ----------------------------------------------
    conv = pl.pallas_call(
        _conv3x3_prelu_kernel,
        out_shape=jax.ShapeDtypeStruct((N, Hp, W, Coutp), jnp.float32),
        grid_spec=pltpu.PrefetchScalarGridSpec(
            num_scalar_prefetch=0,
            grid=(N, nT),
            in_specs=[
                pl.BlockSpec(memory_space=pl.ANY),                   # xk stays in HBM
                pl.BlockSpec((3, Kp, Coutp), lambda n, t: (0, 0, 0)),
                pl.BlockSpec((1, Coutp), lambda n, t: (0, 0)),
                pl.BlockSpec(memory_space=pltpu.MemorySpace.SMEM),   # scalar alpha
            ],
            out_specs=pl.BlockSpec((1, TH, W, Coutp), lambda n, t: (n, t, 0, 0)),
            scratch_shapes=[
                pltpu.VMEM((2, TH + 2, W, Kp), xk.dtype),            # input double-buffer
                pltpu.SemaphoreType.DMA((2,)),
            ],
        ),
        compiler_params=pltpu.CompilerParams(
            dimension_semantics=("parallel", "arbitrary"),
            vmem_limit_bytes=vmem_limit,
        ),
    )
    y = conv(xk, w3, b2, a2)          # (N, Hp, W, Coutp), bias + PReLU already applied
    y = y[:, :H, :, :Cout]            # drop row and channel padding

    # ---- PixelShuffle(2) + NHWC->NCHW as a single 6-D transpose --------------------
    r = 2
    Cf = Cout // (r * r)
    y = y.reshape(N, H, W, Cf, r, r)                 # [n, h, w, cf, i, j]
    y = jnp.transpose(y, (0, 3, 1, 4, 2, 5))         # [n, cf, h, i, w, j]
    return y.reshape(N, Cf, H * r, W * r)            # [n, cf, 2h+i, 2w+j]


def _reference(x_nchw, weight_oihw, bias, prelu_alpha):
    """Pure-JAX reference matching the PyTorch module."""
    y = jax.lax.conv_general_dilated(
        x_nchw, weight_oihw, window_strides=(1, 1), padding=((1, 1), (1, 1)),
        dimension_numbers=("NCHW", "OIHW", "NCHW"),
        precision=jax.lax.Precision.HIGHEST)
    y = y + bias.reshape(1, -1, 1, 1)
    N, C, H, W = y.shape
    r = 2
    Cf = C // (r * r)
    y = y.reshape(N, Cf, r, r, H, W)
    y = jnp.transpose(y, (0, 1, 4, 2, 5, 3)).reshape(N, Cf, H * r, W * r)
    return jnp.where(y >= 0, y, prelu_alpha * y)


if __name__ == "__main__":
    # Small deterministic example: batch=2, in_channels=4, out_channels=8, 16x16.
    N, Cin, Cout, H, W = 2, 4, 8, 16, 16
    key = jax.random.PRNGKey(0)
    kx, kw, kb = jax.random.split(key, 3)

    x = jax.random.normal(kx, (N, Cin, H, W), dtype=jnp.float32)
    fan_in = Cin * 3 * 3
    bound = 1.0 / (fan_in ** 0.5)
    weight = jax.random.uniform(kw, (Cout, Cin, 3, 3), jnp.float32,
                                minval=-bound, maxval=bound)
    bias = jax.random.uniform(kb, (Cout,), jnp.float32,
                              minval=-bound, maxval=bound)
    prelu_alpha = jnp.float32(0.25)   # PyTorch PReLU default init

    ref = _reference(x, weight, bias, prelu_alpha)

    # row_tile=8 forces two spatial tiles per image so the halo / DMA-prefetch chain is
    # exercised; the second call uses the auto-chosen (divisor-preferring) row tile.
    fwd_tiled = jax.jit(lambda xx, ww, bb, aa:
                        upsample_block_forward(xx, ww, bb, aa, row_tile=8))
    fwd_auto = jax.jit(lambda xx, ww, bb, aa:
                       upsample_block_forward(xx, ww, bb, aa))

    for fwd in (fwd_tiled, fwd_auto):
        out = fwd(x, weight, bias, prelu_alpha)
        jax.block_until_ready(out)
        assert out.shape == (N, Cout // 4, 2 * H, 2 * W)
        err = float(jnp.max(jnp.abs(out - ref)))
        assert err < 1e-3, f"max abs error vs reference: {err}"

    print("KERNEL_OK")
</pallas_src>

<mosaic_0001>
module attributes {stable_mosaic.version = 11 : i64} {
  func.func @_conv3x3_prelu_kernel(%arg0: i32, %arg1: i32, %arg2: memref<2x18x16x128xf32, #tpu.memory_space<any>>, %arg3: memref<3x128x128xf32, #tpu.memory_space<vmem>>, %arg4: memref<1x128xf32, #tpu.memory_space<vmem>>, %arg5: memref<1x1xf32, #tpu.memory_space<smem>>, %arg6: memref<1x8x16x128xf32, #tpu.memory_space<vmem>>, %arg7: memref<2x10x16x128xf32, #tpu.memory_space<vmem>>, %arg8: memref<2x!tpu.dma_semaphore, #tpu.memory_space<semaphore_mem>>) attributes {dimension_semantics = [#tpu.dimension_semantics<parallel>, #tpu.dimension_semantics<arbitrary>], iteration_bounds = array<i64: 2, 2>, scalar_prefetch = 0 : i64, scratch_operands = 2 : i64, tpu.core_type = #tpu.core_type<tc>, window_params = [{}, {pipeline_mode = #tpu.pipeline_mode<synchronous>, transform_indices = @transform_1, window_bounds = array<i64: 3, 128, 128>}, {pipeline_mode = #tpu.pipeline_mode<synchronous>, transform_indices = @transform_2, window_bounds = array<i64: 1, 128>}, {transform_indices = @transform_3, window_bounds = array<i64: 1, 1>}, {transform_indices = @transform_4, window_bounds = array<i64: 1, 8, 16, 128>}]} {
    %c2_i32 = arith.constant 2 : i32
    %c0_i32 = arith.constant 0 : i32
    %0 = arith.cmpi eq, %c2_i32, %c0_i32 : i32
    %c1_i32 = arith.constant 1 : i32
    %1 = arith.select %0, %c1_i32, %c2_i32 : i32
    %2 = arith.remsi %arg1, %1 : i32
    %c0_i32_0 = arith.constant 0 : i32
    %3 = arith.cmpi ne, %2, %c0_i32_0 : i32
    %c0_i32_1 = arith.constant 0 : i32
    %4 = arith.cmpi slt, %2, %c0_i32_1 : i32
    %c0_i32_2 = arith.constant 0 : i32
    %5 = arith.cmpi slt, %1, %c0_i32_2 : i32
    %6 = arith.xori %4, %5 : i1
    %7 = arith.andi %6, %3 : i1
    %8 = arith.addi %2, %1 : i32
    %9 = arith.select %7, %8, %2 : i32
    %c0_i32_3 = arith.constant 0 : i32
    %10 = arith.cmpi eq, %arg1, %c0_i32_3 : i32
    %11 = arith.extui %10 : i1 to i32
    %c0_i32_4 = arith.constant 0 : i32
    %12 = arith.cmpi ne, %11, %c0_i32_4 : i32
    scf.if %12 {
      %c0_i32_48 = arith.constant 0 : i32
      %c0_i32_49 = arith.constant 0 : i32
      %c0_i32_50 = arith.constant 0 : i32
      %c0_i32_51 = arith.constant 0 : i32
      %c0_i32_52 = arith.constant 0 : i32
      %60 = tpu.memref_slice %arg2[%arg0, %c0_i32_50, %c0_i32_51, %c0_i32_52] : memref<2x18x16x128xf32, #tpu.memory_space<any>> -> memref<1x10x16x128xf32, #tpu.memory_space<any>>
      %61 = tpu.memref_squeeze %60 : memref<1x10x16x128xf32, #tpu.memory_space<any>> -> memref<10x16x128xf32, #tpu.memory_space<any>>
      %c0_i32_53 = arith.constant 0 : i32
      %c0_i32_54 = arith.constant 0 : i32
      %c0_i32_55 = arith.constant 0 : i32
      %62 = tpu.memref_slice %arg7[%c0_i32_48, %c0_i32_53, %c0_i32_54, %c0_i32_55] : memref<2x10x16x128xf32, #tpu.memory_space<vmem>> -> memref<1x10x16x128xf32, #tpu.memory_space<vmem>>
      %63 = tpu.memref_squeeze %62 : memref<1x10x16x128xf32, #tpu.memory_space<vmem>> -> memref<10x16x128xf32, #tpu.memory_space<vmem>>
      %64 = tpu.memref_slice %arg8[%c0_i32_49] : memref<2x!tpu.dma_semaphore, #tpu.memory_space<semaphore_mem>> -> memref<1x!tpu.dma_semaphore, #tpu.memory_space<semaphore_mem>>
      %65 = tpu.memref_squeeze %64 : memref<1x!tpu.dma_semaphore, #tpu.memory_space<semaphore_mem>> -> memref<!tpu.dma_semaphore, #tpu.memory_space<semaphore_mem>>
      tpu.enqueue_dma source(%61 : memref<10x16x128xf32, #tpu.memory_space<any>>) target(%63 : memref<10x16x128xf32, #tpu.memory_space<vmem>>) target_semaphore(%65 : memref<!tpu.dma_semaphore, #tpu.memory_space<semaphore_mem>>)
    } else {
    }
    %c1_i32_5 = arith.constant 1 : i32
    %13 = arith.addi %arg1, %c1_i32_5 : i32
    %c2_i32_6 = arith.constant 2 : i32
    %14 = arith.cmpi slt, %13, %c2_i32_6 : i32
    %15 = arith.extui %14 : i1 to i32
    %c0_i32_7 = arith.constant 0 : i32
    %16 = arith.cmpi ne, %15, %c0_i32_7 : i32
    scf.if %16 {
      %c1_i32_48 = arith.constant 1 : i32
      %60 = arith.addi %arg1, %c1_i32_48 : i32
      %c1_i32_49 = arith.constant 1 : i32
      %61 = arith.subi %c1_i32_49, %9 : i32
      %c8_i32_50 = arith.constant 8 : i32
      %62 = arith.muli %60, %c8_i32_50 : i32
      %c0_i32_51 = arith.constant 0 : i32
      %c0_i32_52 = arith.constant 0 : i32
      %63 = tpu.memref_slice %arg2[%arg0, %62, %c0_i32_51, %c0_i32_52] : memref<2x18x16x128xf32, #tpu.memory_space<any>> -> memref<1x10x16x128xf32, #tpu.memory_space<any>>
      %64 = tpu.memref_squeeze %63 : memref<1x10x16x128xf32, #tpu.memory_space<any>> -> memref<10x16x128xf32, #tpu.memory_space<any>>
      %c0_i32_53 = arith.constant 0 : i32
      %c0_i32_54 = arith.constant 0 : i32
      %c0_i32_55 = arith.constant 0 : i32
      %65 = tpu.memref_slice %arg7[%61, %c0_i32_53, %c0_i32_54, %c0_i32_55] : memref<2x10x16x128xf32, #tpu.memory_space<vmem>> -> memref<1x10x16x128xf32, #tpu.memory_space<vmem>>
      %66 = tpu.memref_squeeze %65 : memref<1x10x16x128xf32, #tpu.memory_space<vmem>> -> memref<10x16x128xf32, #tpu.memory_space<vmem>>
      %67 = tpu.memref_slice %arg8[%61] : memref<2x!tpu.dma_semaphore, #tpu.memory_space<semaphore_mem>> -> memref<1x!tpu.dma_semaphore, #tpu.memory_space<semaphore_mem>>
      %68 = tpu.memref_squeeze %67 : memref<1x!tpu.dma_semaphore, #tpu.memory_space<semaphore_mem>> -> memref<!tpu.dma_semaphore, #tpu.memory_space<semaphore_mem>>
      tpu.enqueue_dma source(%64 : memref<10x16x128xf32, #tpu.memory_space<any>>) target(%66 : memref<10x16x128xf32, #tpu.memory_space<vmem>>) target_semaphore(%68 : memref<!tpu.dma_semaphore, #tpu.memory_space<semaphore_mem>>)
    } else {
    }
    %c8_i32 = arith.constant 8 : i32
    %17 = arith.muli %arg1, %c8_i32 : i32
    %c0_i32_8 = arith.constant 0 : i32
    %c0_i32_9 = arith.constant 0 : i32
    %18 = tpu.memref_slice %arg2[%arg0, %17, %c0_i32_8, %c0_i32_9] : memref<2x18x16x128xf32, #tpu.memory_space<any>> -> memref<1x10x16x128xf32, #tpu.memory_space<any>>
    %19 = tpu.memref_squeeze %18 : memref<1x10x16x128xf32, #tpu.memory_space<any>> -> memref<10x16x128xf32, #tpu.memory_space<any>>
    %c0_i32_10 = arith.constant 0 : i32
    %c0_i32_11 = arith.constant 0 : i32
    %c0_i32_12 = arith.constant 0 : i32
    %20 = tpu.memref_slice %arg7[%9, %c0_i32_10, %c0_i32_11, %c0_i32_12] : memref<2x10x16x128xf32, #tpu.memory_space<vmem>> -> memref<1x10x16x128xf32, #tpu.memory_space<vmem>>
    %21 = tpu.memref_squeeze %20 : memref<1x10x16x128xf32, #tpu.memory_space<vmem>> -> memref<10x16x128xf32, #tpu.memory_space<vmem>>
    %22 = tpu.memref_slice %arg8[%9] : memref<2x!tpu.dma_semaphore, #tpu.memory_space<semaphore_mem>> -> memref<1x!tpu.dma_semaphore, #tpu.memory_space<semaphore_mem>>
    %23 = tpu.memref_squeeze %22 : memref<1x!tpu.dma_semaphore, #tpu.memory_space<semaphore_mem>> -> memref<!tpu.dma_semaphore, #tpu.memory_space<semaphore_mem>>
    tpu.wait_dma2 semaphore(%23 : memref<!tpu.dma_semaphore, #tpu.memory_space<semaphore_mem>>) src(%19 : memref<10x16x128xf32, #tpu.memory_space<any>>) dst(%21 : memref<10x16x128xf32, #tpu.memory_space<vmem>>)
    %c0_i32_13 = arith.constant 0 : i32
    %c0_i32_14 = arith.constant 0 : i32
    %c0_i32_15 = arith.constant 0 : i32
    %24 = tpu.memref_slice %arg7[%9, %c0_i32_13, %c0_i32_14, %c0_i32_15] : memref<2x10x16x128xf32, #tpu.memory_space<vmem>> -> memref<1x10x16x128xf32, #tpu.memory_space<vmem>>
    %25 = tpu.memref_squeeze %24 : memref<1x10x16x128xf32, #tpu.memory_space<vmem>> -> memref<10x16x128xf32, #tpu.memory_space<vmem>>
    %c0 = arith.constant 0 : index
    %c0_16 = arith.constant 0 : index
    %c0_17 = arith.constant 0 : index
    %26 = vector.load %25[%c0, %c0_16, %c0_17] : memref<10x16x128xf32, #tpu.memory_space<vmem>>, vector<8x16x128xf32>
    %27 = vector.shape_cast %26 : vector<8x16x128xf32> to vector<128x128xf32>
    %c0_18 = arith.constant 0 : index
    %c0_19 = arith.constant 0 : index
    %c0_20 = arith.constant 0 : index
    %28 = vector.load %arg3[%c0_18, %c0_19, %c0_20] : memref<3x128x128xf32, #tpu.memory_space<vmem>>, vector<1x128x128xf32>
    %29 = vector.shape_cast %28 : vector<1x128x128xf32> to vector<128x128xf32>
    %cst = arith.constant dense<0.000000e+00> : vector<128x128xf32>
    %30 = tpu.matmul %27, %29, %cst {dimension_numbers = #tpu.dot_dimension_numbers<[1], [0], [0], [1], [0, 0, 1, 1], [], []>} : vector<128x128xf32>, vector<128x128xf32>, vector<128x128xf32> -> vector<128x128xf32>
    %c0_i32_21 = arith.constant 0 : i32
    %c0_i32_22 = arith.constant 0 : i32
    %c0_i32_23 = arith.constant 0 : i32
    %31 = tpu.memref_slice %arg7[%9, %c0_i32_21, %c0_i32_22, %c0_i32_23] : memref<2x10x16x128xf32, #tpu.memory_space<vmem>> -> memref<1x10x16x128xf32, #tpu.memory_space<vmem>>
    %32 = tpu.memref_squeeze %31 : memref<1x10x16x128xf32, #tpu.memory_space<vmem>> -> memref<10x16x128xf32, #tpu.memory_space<vmem>>
    %c1 = arith.constant 1 : index
    %c0_24 = arith.constant 0 : index
    %c0_25 = arith.constant 0 : index
    %33 = vector.load %32[%c1, %c0_24, %c0_25] : memref<10x16x128xf32, #tpu.memory_space<vmem>>, vector<8x16x128xf32>
    %34 = vector.shape_cast %33 : vector<8x16x128xf32> to vector<128x128xf32>
    %c1_26 = arith.constant 1 : index
    %c0_27 = arith.constant 0 : index
    %c0_28 = arith.constant 0 : index
    %35 = vector.load %arg3[%c1_26, %c0_27, %c0_28] : memref<3x128x128xf32, #tpu.memory_space<vmem>>, vector<1x128x128xf32>
    %36 = vector.shape_cast %35 : vector<1x128x128xf32> to vector<128x128xf32>
    %cst_29 = arith.constant dense<0.000000e+00> : vector<128x128xf32>
    %37 = tpu.matmul %34, %36, %cst_29 {dimension_numbers = #tpu.dot_dimension_numbers<[1], [0], [0], [1], [0, 0, 1, 1], [], []>} : vector<128x128xf32>, vector<128x128xf32>, vector<128x128xf32> -> vector<128x128xf32>
    %38 = arith.addf %30, %37 : vector<128x128xf32>
    %c0_i32_30 = arith.constant 0 : i32
    %c0_i32_31 = arith.constant 0 : i32
    %c0_i32_32 = arith.constant 0 : i32
    %39 = tpu.memref_slice %arg7[%9, %c0_i32_30, %c0_i32_31, %c0_i32_32] : memref<2x10x16x128xf32, #tpu.memory_space<vmem>> -> memref<1x10x16x128xf32, #tpu.memory_space<vmem>>
    %40 = tpu.memref_squeeze %39 : memref<1x10x16x128xf32, #tpu.memory_space<vmem>> -> memref<10x16x128xf32, #tpu.memory_space<vmem>>
    %c2 = arith.constant 2 : index
    %c0_33 = arith.constant 0 : index
    %c0_34 = arith.constant 0 : index
    %41 = vector.load %40[%c2, %c0_33, %c0_34] : memref<10x16x128xf32, #tpu.memory_space<vmem>>, vector<8x16x128xf32>
    %42 = vector.shape_cast %41 : vector<8x16x128xf32> to vector<128x128xf32>
    %c2_35 = arith.constant 2 : index
    %c0_36 = arith.constant 0 : index
    %c0_37 = arith.constant 0 : index
    %43 = vector.load %arg3[%c2_35, %c0_36, %c0_37] : memref<3x128x128xf32, #tpu.memory_space<vmem>>, vector<1x128x128xf32>
    %44 = vector.shape_cast %43 : vector<1x128x128xf32> to vector<128x128xf32>
    %cst_38 = arith.constant dense<0.000000e+00> : vector<128x128xf32>
    %45 = tpu.matmul %42, %44, %cst_38 {dimension_numbers = #tpu.dot_dimension_numbers<[1], [0], [0], [1], [0, 0, 1, 1], [], []>} : vector<128x128xf32>, vector<128x128xf32>, vector<128x128xf32> -> vector<128x128xf32>
    %46 = arith.addf %38, %45 : vector<128x128xf32>
    %c0_39 = arith.constant 0 : index
    %c0_40 = arith.constant 0 : index
    %47 = vector.load %arg4[%c0_39, %c0_40] : memref<1x128xf32, #tpu.memory_space<vmem>>, vector<1x128xf32>
    %48 = vector.shape_cast %47 : vector<1x128xf32> to vector<128xf32>
    %49 = vector.shape_cast %48 : vector<128xf32> to vector<1x128xf32>
    %50 = vector.broadcast %49 : vector<1x128xf32> to vector<128x128xf32>
    %51 = arith.addf %46, %50 : vector<128x128xf32>
    %c0_41 = arith.constant 0 : index
    %c0_42 = arith.constant 0 : index
    %52 = memref.load %arg5[%c0_41, %c0_42] : memref<1x1xf32, #tpu.memory_space<smem>>
    %cst_43 = arith.constant 0.000000e+00 : f32
    %53 = vector.broadcast %cst_43 : f32 to vector<128x128xf32>
    %54 = arith.cmpf oge, %51, %53 : vector<128x128xf32>
    %55 = vector.broadcast %52 : f32 to vector<128x128xf32>
    %56 = arith.mulf %55, %51 : vector<128x128xf32>
    %57 = arith.select %54, %51, %56 : vector<128x128xi1>, vector<128x128xf32>
    %58 = vector.shape_cast %57 : vector<128x128xf32> to vector<1x8x16x128xf32>
    %c0_44 = arith.constant 0 : index
    %c0_45 = arith.constant 0 : index
    %c0_46 = arith.constant 0 : index
    %c0_47 = arith.constant 0 : index
    %59 = vector.load %arg6[%c0_44, %c0_45, %c0_46, %c0_47] : memref<1x8x16x128xf32, #tpu.memory_space<vmem>>, vector<1x8x16x128xf32>
    tpu.vector_store %arg6[%c0_44, %c0_45, %c0_46, %c0_47], %58 {strides = array<i32>} : memref<1x8x16x128xf32, #tpu.memory_space<vmem>>, vector<1x8x16x128xf32>,
    return
  }
  func.func @transform_1(%arg0: i32, %arg1: i32) -> (i32, i32, i32) {
    %c0_i32 = arith.constant 0 : i32
    %c0_i32_0 = arith.constant 0 : i32
    %c0_i32_1 = arith.constant 0 : i32
    %c0_i32_2 = arith.constant 0 : i32
    return %c0_i32, %c0_i32_0, %c0_i32_1 : i32, i32, i32
  }
  func.func @transform_2(%arg0: i32, %arg1: i32) -> (i32, i32) {
    %c0_i32 = arith.constant 0 : i32
    %c0_i32_0 = arith.constant 0 : i32
    %c0_i32_1 = arith.constant 0 : i32
    return %c0_i32, %c0_i32_0 : i32, i32
  }
  func.func @transform_3(%arg0: i32, %arg1: i32) -> (i32, i32) {
    %c0_i32 = arith.constant 0 : i32
    %c0_i32_0 = arith.constant 0 : i32
    %c0_i32_1 = arith.constant 0 : i32
    return %c0_i32, %c0_i32_0 : i32, i32
  }
  func.func @transform_4(%arg0: i32, %arg1: i32) -> (i32, i32, i32, i32) {
    %c0_i32 = arith.constant 0 : i32
    %c0_i32_0 = arith.constant 0 : i32
    %c0_i32_1 = arith.constant 0 : i32
    return %arg0, %arg1, %c0_i32, %c0_i32_0 : i32, i32, i32, i32
  }
}

</mosaic_0001>

<llo_original>
// kernel: _lambda_.1
$region0: #{_lambda_.1}
  #allocation0 [shape = 'u32[]', space=smem, size = 0x4, offset = 0x4, fixed_abs, tag = 'smem constant byte address 0x4 - core index']
  #allocation1 [shape = 'u32[144,128]{1,0:T(1,128)}', space=vmem, size = 0x12000, scoped, tag = 'internal scratch']
  #allocation2 [shape = 'f32[2,10,16,128]{3,2,1,0:T(8,128)}', space=vmem, size = 0x28000, scoped, tag = 'scratch operand']
  #allocation3 [shape = 's32[2]{0}', space=sflag, size = 0x8, scoped, tag = 'scratch operand']
  #allocation4 [shape = 'f32[1,1]{1,0:T(1,128)S(6)}', space=smem, size = 0x200, scoped, tag = 'scoped memory for _lambda_.1']
  #allocation5 [shape = 's32[]', space=sflag, size = 0x4, offset = 0, fixed_abs, tag = 'sflag constant byte address 0x0 - dummy sync flag']
  #allocation6 [shape = 's32[]', space=sflag, size = 0x4, offset = 0, fixed_abs, tag = 'sflag constant byte address 0x0 - dummy sync flag']
  %s0 = inlined_call_operand.vmem [shape: f32[2,18,16,128], index: 0, kind: input, shape index: {}]
  %s1 = inlined_call_operand.vmem [shape: f32[3,128,128], index: 1, kind: input, shape index: {}]
  %s2 = inlined_call_operand.vmem [shape: f32[1,128], index: 2, kind: input, shape index: {}]
  %s3 = inlined_call_operand.<no memory space> [shape: f32[1,1], index: 3, kind: input, shape index: {}]
  %s4 = inlined_call_operand.vmem [shape: f32[2,16,16,128], index: 4, kind: output, shape index: {}]
  %s5 = sld [smem:[#allocation0]]
  $region121: #{_lambda_.1} parent=0
    _
  %s7 = ssub.s32 1, %s5
  %s8 = scalar_select 0, %s7, %s5
  %9 = sst [smem:[#allocation4]] %s3
  loop: start=0, step=1, limit=6
  $region2: #{_lambda_.1} parent=0 // loop_pre_header
    _
  $region3: #{_lambda_.1} parent=0 // loop_header
    %s11 = sphi 0, %s15
    %p12 = scmp.ge.s32.totalorder %s11, 6
    %s18 = sphi 0, %s30
    %s19 = sphi 0, %s26
    %s20 = sphi 0, %s18
    %s21 = sphi 0, %s19
    %s22 = sphi 0, %s20
    %s23 = sphi 0, %s21
    %s31 = sphi 0, %s31
    %s33 = sphi 0, %s31
    %s34 = sphi 0, %s33
    %s48 = sphi 0, %s34
    %s52 = sphi 0, %s52
    %s54 = sphi 0, %s52
    %s55 = sphi 0, %s54
    %s69 = sphi 0, %s55
    %s73 = sphi 0, %s73
    %s75 = sphi 0, %s73
    %s76 = sphi 0, %s75
    %s90 = sphi 0, %s76
    %s98 = sphi 0, %s100
    %s101 = sphi 0, %s98
    %s102 = sphi 0, %s101
    %s118 = sphi 0, %s102
  $region4: #{_lambda_.1} parent=0 // loop_header_branch
    %14 = sbr.rel (%p12) target = $region8
  $region5: #{_lambda_.1} parent=0 // loop_body
    %s16 = ssub.s32 %s11, 1
    %s17 = ssub.s32 %s11, 2
    %s24 = sadd.s32 1, %s19
    %p25 = scmp.ge.s32.totalorder %s24, 2
    %s26 = scalar_select %p25, 0, %s24
    %s27 = sadd.s32 1, %s18
    %s28 = scalar_select %p25, %s27, %s18
    %p29 = scmp.ge.s32.totalorder %s28, 2
    %s30 = scalar_select %p29, 0, %s28
    %s32 = sadd.s32 %s31, 1
    %p35 = scmp.eq.s32.totalorder %s11, 3
    %p36 = scmp.ne.s32.totalorder %s31, %s33
    %p37 = scmp.eq.s32.totalorder %s11, 0
    %p38 = por %p36, %p37
    %p39 = scmp.ne.s32.totalorder %s31, %s33
    %p40 = scmp.eq.s32.totalorder %s16, 3
    %p41 = por %p39, %p40
    %p42 = scmp.ne.s32.totalorder %s33, %s34
    %p43 = scmp.eq.s32.totalorder %s16, 0
    %p44 = por %p42, %p43
    %p45 = scmp.ne.s32.totalorder %s33, %s34
    %p46 = scmp.eq.s32.totalorder %s17, 3
    %p47 = por %p45, %p46
    %p49 = scmp.ne.s32.totalorder %s34, %s48
    %p50 = scmp.eq.s32.totalorder %s17, 0
    %p51 = por %p49, %p50
    %s53 = sadd.s32 %s52, 1
    %p56 = scmp.eq.s32.totalorder %s11, 3
    %p57 = scmp.ne.s32.totalorder %s52, %s54
    %p58 = scmp.eq.s32.totalorder %s11, 0
    %p59 = por %p57, %p58
    %p60 = scmp.ne.s32.totalorder %s52, %s54
    %p61 = scmp.eq.s32.totalorder %s16, 3
    %p62 = por %p60, %p61
    %p63 = scmp.ne.s32.totalorder %s54, %s55
    %p64 = scmp.eq.s32.totalorder %s16, 0
    %p65 = por %p63, %p64
    %p66 = scmp.ne.s32.totalorder %s54, %s55
    %p67 = scmp.eq.s32.totalorder %s17, 3
    %p68 = por %p66, %p67
    %p70 = scmp.ne.s32.totalorder %s55, %s69
    %p71 = scmp.eq.s32.totalorder %s17, 0
    %p72 = por %p70, %p71
    %s74 = sadd.s32 %s73, 1
    %p77 = scmp.eq.s32.totalorder %s11, 3
    %p78 = scmp.ne.s32.totalorder %s73, %s75
    %p79 = scmp.eq.s32.totalorder %s11, 0
    %p80 = por %p78, %p79
    %p81 = scmp.ne.s32.totalorder %s73, %s75
    %p82 = scmp.eq.s32.totalorder %s16, 3
    %p83 = por %p81, %p82
    %p84 = scmp.ne.s32.totalorder %s75, %s76
    %p85 = scmp.eq.s32.totalorder %s16, 0
    %p86 = por %p84, %p85
    %p87 = scmp.ne.s32.totalorder %s75, %s76
    %p88 = scmp.eq.s32.totalorder %s17, 3
    %p89 = por %p87, %p88
    %p91 = scmp.ne.s32.totalorder %s76, %s90
    %p92 = scmp.eq.s32.totalorder %s17, 0
    %p93 = por %p91, %p92
    %s94 = ssub.s32 %s18, %s30
    %s95 = ssub.s32 %s19, %s26
    %s96 = sor.u32 %s94, %s95
    %p97 = scmp.eq.s32.totalorder %s96, 0
    %s99 = sadd.s32 %s98, 1
    %s100 = scalar_select %p97, %s98, %s99
    %p103 = pneg %p97
    %p104 = scmp.eq.s32.totalorder %s11, 3
    %p105 = por %p103, %p104
    %p106 = scmp.ne.s32.totalorder %s98, %s101
    %p107 = scmp.eq.s32.totalorder %s11, 0
    %p108 = por %p106, %p107
    %p109 = scmp.ne.s32.totalorder %s98, %s101
    %p110 = scmp.eq.s32.totalorder %s16, 3
    %p111 = por %p109, %p110
    %p112 = scmp.ne.s32.totalorder %s101, %s102
    %p113 = scmp.eq.s32.totalorder %s16, 0
    %p114 = por %p112, %p113
    %p115 = scmp.ne.s32.totalorder %s101, %s102
    %p116 = scmp.eq.s32.totalorder %s17, 3
    %p117 = por %p115, %p116
    %p119 = scmp.ne.s32.totalorder %s102, %s118
    %p120 = scmp.eq.s32.totalorder %s17, 0
    %p121 = por %p119, %p120
    %p122 = scmp.le.s32.totalorder 1, %s11
    %p123 = scmp.lt.s32.totalorder %s11, 5
    %p124 = pnand %p122, %p123
    %p125 = pneg %p124
    // Predicated region
    $region9: #{_lambda_.1} parent=5 // pred_check
      _
    $region10: #{_lambda_.1} parent=5 // pred_check_branch
      %127 = sbr.rel (%p124) target = $region12
    $region11: #{_lambda_.1} parent=5 // pred_region
      %s128 = ssub.s32 %s11, 1
      // Predicated region
      $region13: #{_lambda_.1} parent=11 // pred_check
        %p129 = pneg %p44
      $region14: #{_lambda_.1} parent=11 // pred_check_branch
        %131 = sbr.rel (%p129) target = $region16
      $region15: #{_lambda_.1} parent=11 // pred_region
        _
      $region16: #{_lambda_.1} parent=11 // pred_fallthru
        _
      // Predicated region
      $region17: #{_lambda_.1} parent=11 // pred_check
        %p132 = pneg %p65
      $region18: #{_lambda_.1} parent=11 // pred_check_branch
        %134 = sbr.rel (%p132) target = $region20
      $region19: #{_lambda_.1} parent=11 // pred_region
        _
      $region20: #{_lambda_.1} parent=11 // pred_fallthru
        _
      // Predicated region
      $region21: #{_lambda_.1} parent=11 // pred_check
        %p135 = pneg %p86
      $region22: #{_lambda_.1} parent=11 // pred_check_branch
        %137 = sbr.rel (%p135) target = $region24
      $region23: #{_lambda_.1} parent=11 // pred_region
        _
      $region24: #{_lambda_.1} parent=11 // pred_fallthru
        _
    $region12: #{_lambda_.1} parent=5 // pred_fallthru
      _
    %p138 = scmp.lt.s32.totalorder %s11, 4
    // Predicated region
    $region25: #{_lambda_.1} parent=5 // pred_check
      %p139 = pneg %p138
    $region26: #{_lambda_.1} parent=5 // pred_check_branch
      %141 = sbr.rel (%p139) target = $region28
    $region27: #{_lambda_.1} parent=5 // pred_region
      _
    $region28: #{_lambda_.1} parent=5 // pred_fallthru
      _
    %p142 = scmp.le.s32.totalorder 1, %s11
    %p143 = scmp.lt.s32.totalorder %s11, 5
    %p144 = pnand %p142, %p143
    %p145 = pneg %p144
    // Predicated region
    $region29: #{_lambda_.1} parent=5 // pred_check
      _
    $region30: #{_lambda_.1} parent=5 // pred_check_branch
      %147 = sbr.rel (%p144) target = $region32
    $region31: #{_lambda_.1} parent=5 // pred_region
      %s148 = ssub.s32 %s11, 1
      %p149 = pneg %p44
      %p150 = pneg %p41
      %p151 = pneg %p65
      %p152 = pneg %p62
      %p153 = pneg %p86
      %p154 = pneg %p83
      %p155 = pneg %p114
      %p156 = pneg %p111
      %s157 = smul.u32 8, %s21
      %p158 = scmp.lt.s32.totalorder %s20, 1
      %s159 = scalar_select %p158, %s20, 1
      %p160 = scmp.lt.s32.totalorder %s157, 15
      %s161 = scalar_select %p160, %s157, 15
      %s162 = smul.addr %s161, 2
      %s163 = smul.addr %s159, 32
      %s164 = sadd.s32 %s162, %s163
      %s165 = smul.addr %s164, 8
      %s166 = scalar_lea.vmem %s4, %s165
      %s167 = smul.u32 8, %s21
      %p168 = scmp.lt.s32.totalorder %s20, 1
      %s169 = scalar_select %p168, %s20, 1
      %p170 = scmp.lt.s32.totalorder %s167, 15
      %s171 = scalar_select %p170, %s167, 15
      %s172 = smul.addr %s171, 2
      %s173 = smul.addr %s169, 32
      %s174 = sadd.s32 %s172, %s173
      %s175 = smul.addr %s174, 8
      %s176 = scalar_lea.vmem %s4, %s175
      %s177 = smul.u32 8, %s21
      %p178 = scmp.lt.s32.totalorder %s21, 0
      %s179 = ssub.s32 0, %s21
      %s180 = scalar_select %p178, %s179, %s21
      %s181 = sand.u32 %s180, 1
      %s182 = ssub.s32 0, %s181
      %s183 = scalar_select %p178, %s182, %s181
      %p184 = scmp.ne.s32.totalorder %s183, 0
      %p185 = scmp.lt.s32.totalorder %s183, 0
      %p186 = pnand %p185, %p184
      %p187 = pneg %p186
      %s188 = sadd.s32 %s183, 2
      %s189 = scalar_select %p187, %s188, %s183
      %p190 = scmp.eq.s32.totalorder %s21, 0
      // Predicated region
      $region33: #{_lambda_.1} parent=31 // pred_check
        %p191 = pneg %p190
      $region34: #{_lambda_.1} parent=31 // pred_check_branch
        %193 = sbr.rel (%p191) target = $region36
      $region35: #{_lambda_.1} parent=31 // pred_region
        %s194 = smul.u32 %s20, 288
        %s195 = scalar_lea.vmem %s0, %s194
        %p197 = scmp.lt.u32.totalorder 160, 8
        %p198 = pneg %p197
        // Predicated region
        $region37: #{_lambda_.1} parent=35 // pred_check
          _
        $region38: #{_lambda_.1} parent=35 // pred_check_branch
          %200 = sbr.rel (%p197) target = $region40
        $region39: #{_lambda_.1} parent=35 // pred_region
          %s215 = sand.u32 160, 7
          %p216 = scmp.eq.s32.totalorder %s215, 0
          // Predicated region
          $region52: #{_lambda_.1} parent=39 // pred_check
            %p217 = pneg %p216
          $region53: #{_lambda_.1} parent=39 // pred_check_branch
            %219 = sbr.rel (%p217) target = $region55
          $region54: #{_lambda_.1} parent=39 // pred_region
            loop: start=0, step=1, limit=1
            $region56: #{_lambda_.1} parent=54 // loop_pre_header
              _
            $region57: #{_lambda_.1} parent=54 // loop_header
              %s221 = sphi 0, %s225
              %p222 = scmp.ge.s32.totalorder %s221, 1
              %s226 = sphi %s195, %s195
              %s227 = sphi [#allocation2], [#allocation2]
            $region58: #{_lambda_.1} parent=54 // loop_header_branch
              %224 = sbr.rel (%p222) target = $region62
            $region59: #{_lambda_.1} parent=54 // loop_body
              %v228 = vld [vmem:[%s226] sm:$0xff]
              %229 = vst [vmem:[%s227] sm:$0xff] %v228
              %v230 = vld [vmem:[%s226 + $0x8] sm:$0xff]
              %231 = vst [vmem:[%s227 + $0x8] sm:$0xff] %v230
              %v232 = vld [vmem:[%s226 + $0x10] sm:$0xff]
              %233 = vst [vmem:[%s227 + $0x10] sm:$0xff] %v232
              %v234 = vld [vmem:[%s226 + $0x18] sm:$0xff]
              %235 = vst [vmem:[%s227 + $0x18] sm:$0xff] %v234
              %v236 = vld [vmem:[%s226 + $0x20] sm:$0xff]
              %237 = vst [vmem:[%s227 + $0x20] sm:$0xff] %v236
              %v238 = vld [vmem:[%s226 + $0x28] sm:$0xff]
              %239 = vst [vmem:[%s227 + $0x28] sm:$0xff] %v238
              %v240 = vld [vmem:[%s226 + $0x30] sm:$0xff]
              %241 = vst [vmem:[%s227 + $0x30] sm:$0xff] %v240
              %v242 = vld [vmem:[%s226 + $0x38] sm:$0xff]
              %243 = vst [vmem:[%s227 + $0x38] sm:$0xff] %v242
              %v244 = vld [vmem:[%s226 + $0x40] sm:$0xff]
              %245 = vst [vmem:[%s227 + $0x40] sm:$0xff] %v244
              %v246 = vld [vmem:[%s226 + $0x48] sm:$0xff]
              %247 = vst [vmem:[%s227 + $0x48] sm:$0xff] %v246
              %v248 = vld [vmem:[%s226 + $0x50] sm:$0xff]
              %249 = vst [vmem:[%s227 + $0x50] sm:$0xff] %v248
              %v250 = vld [vmem:[%s226 + $0x58] sm:$0xff]
              %251 = vst [vmem:[%s227 + $0x58] sm:$0xff] %v250
              %v252 = vld [vmem:[%s226 + $0x60] sm:$0xff]
              %253 = vst [vmem:[%s227 + $0x60] sm:$0xff] %v252
              %v254 = vld [vmem:[%s226 + $0x68] sm:$0xff]
              %255 = vst [vmem:[%s227 + $0x68] sm:$0xff] %v254
              %v256 = vld [vmem:[%s226 + $0x70] sm:$0xff]
              %257 = vst [vmem:[%s227 + $0x70] sm:$0xff] %v256
              %v258 = vld [vmem:[%s226 + $0x78] sm:$0xff]
              %259 = vst [vmem:[%s227 + $0x78] sm:$0xff] %v258
              %v260 = vld [vmem:[%s226 + $0x80] sm:$0xff]
              %261 = vst [vmem:[%s227 + $0x80] sm:$0xff] %v260
              %v262 = vld [vmem:[%s226 + $0x88] sm:$0xff]
              %263 = vst [vmem:[%s227 + $0x88] sm:$0xff] %v262
              %v264 = vld [vmem:[%s226 + $0x90] sm:$0xff]
              %265 = vst [vmem:[%s227 + $0x90] sm:$0xff] %v264
              %v266 = vld [vmem:[%s226 + $0x98] sm:$0xff]
              %267 = vst [vmem:[%s227 + $0x98] sm:$0xff] %v266
            $region60: #{_lambda_.1} parent=54 // loop_footer
              %s225 = sadd.s32 1, %s221
            $region61: #{_lambda_.1} parent=54 // loop_footer_branch
              %220 = sbr.rel target = $region57
            $region62: #{_lambda_.1} parent=54 // loop_exit
              _
          $region55: #{_lambda_.1} parent=39 // pred_fallthru
            _
          %p268 = pneg %p216
          // Predicated region
          $region63: #{_lambda_.1} parent=39 // pred_check
            _
          $region64: #{_lambda_.1} parent=39 // pred_check_branch
            %270 = sbr.rel (%p216) target = $region66
          $region65: #{_lambda_.1} parent=39 // pred_region
            %s271 = sand.u32 160, 7
          $region66: #{_lambda_.1} parent=39 // pred_fallthru
            _
        $region40: #{_lambda_.1} parent=35 // pred_fallthru
          _
        // Predicated region
        $region41: #{_lambda_.1} parent=35 // pred_check
          %p201 = pneg %p197
        $region42: #{_lambda_.1} parent=35 // pred_check_branch
          %203 = sbr.rel (%p201) target = $region44
        $region43: #{_lambda_.1} parent=35 // pred_region
          %s204 = sshllo.u32 0, 160
          loop: start=0, step=1, limit=1
          $region45: #{_lambda_.1} parent=43 // loop_pre_header
            _
          $region46: #{_lambda_.1} parent=43 // loop_header
            %s206 = sphi 0, %s210
            %p207 = scmp.ge.s32.totalorder %s206, 1
            %s211 = sphi %s195, %s195
            %s212 = sphi [#allocation2], [#allocation2]
          $region47: #{_lambda_.1} parent=43 // loop_header_branch
            %209 = sbr.rel (%p207) target = $region51
          $region48: #{_lambda_.1} parent=43 // loop_body
            %v213 = vld [vmem:[%s211] sm:%s204]
            %214 = vst [vmem:[%s212] sm:%s204] %v213
          $region49: #{_lambda_.1} parent=43 // loop_footer
            %s210 = sadd.s32 1, %s206
          $region50: #{_lambda_.1} parent=43 // loop_footer_branch
            %205 = sbr.rel target = $region46
          $region51: #{_lambda_.1} parent=43 // loop_exit
            _
        $region44: #{_lambda_.1} parent=35 // pred_fallthru
          _
        // Predicated region
        $region67: #{_lambda_.1} parent=35 // pred_check
          _
        $region68: #{_lambda_.1} parent=35 // pred_check_branch
          %274 = sbr.rel (0) target = $region70
        $region69: #{_lambda_.1} parent=35 // pred_region
          %275 = vsyncadd [#allocation3], 2560
        $region70: #{_lambda_.1} parent=35 // pred_fallthru
          _
      $region36: #{_lambda_.1} parent=31 // pred_fallthru
        _
      %s276 = sadd.s32 %s21, 1
      %p277 = scmp.lt.s32.totalorder %s276, 2
      // Predicated region
      $region71: #{_lambda_.1} parent=31 // pred_check
        %p278 = pneg %p277
      $region72: #{_lambda_.1} parent=31 // pred_check_branch
        %280 = sbr.rel (%p278) target = $region74
      $region73: #{_lambda_.1} parent=31 // pred_region
        %s281 = ssub.s32 1, %s189
        %s282 = smul.u32 %s276, 8
        %s283 = smul.u32 %s282, 16
        %s284 = smul.u32 %s20, 288
        %s285 = sadd.s32 %s283, %s284
        %s286 = scalar_lea.vmem %s0, %s285
        %s287 = smul.u32 %s281, 160
        %s288 = scalar_lea.vmem [#allocation2], %s287
        %s289 = scalar_lea.sflag [#allocation3], %s281
        %p291 = scmp.lt.u32.totalorder 160, 8
        %p292 = pneg %p291
        // Predicated region
        $region75: #{_lambda_.1} parent=73 // pred_check
          _
        $region76: #{_lambda_.1} parent=73 // pred_check_branch
          %294 = sbr.rel (%p291) target = $region78
        $region77: #{_lambda_.1} parent=73 // pred_region
          %s309 = sand.u32 160, 7
          %p310 = scmp.eq.s32.totalorder %s309, 0
          // Predicated region
          $region90: #{_lambda_.1} parent=77 // pred_check
            %p311 = pneg %p310
          $region91: #{_lambda_.1} parent=77 // pred_check_branch
            %313 = sbr.rel (%p311) target = $region93
          $region92: #{_lambda_.1} parent=77 // pred_region
            loop: start=0, step=1, limit=1
            $region94: #{_lambda_.1} parent=92 // loop_pre_header
              _
            $region95: #{_lambda_.1} parent=92 // loop_header
              %s315 = sphi 0, %s319
              %p316 = scmp.ge.s32.totalorder %s315, 1
              %s320 = sphi %s286, %s286
              %s321 = sphi %s288, %s288
            $region96: #{_lambda_.1} parent=92 // loop_header_branch
              %318 = sbr.rel (%p316) target = $region100
            $region97: #{_lambda_.1} parent=92 // loop_body
              %v322 = vld [vmem:[%s320] sm:$0xff]
              %323 = vst [vmem:[%s321] sm:$0xff] %v322
              %v324 = vld [vmem:[%s320 + $0x8] sm:$0xff]
              %325 = vst [vmem:[%s321 + $0x8] sm:$0xff] %v324
              %v326 = vld [vmem:[%s320 + $0x10] sm:$0xff]
              %327 = vst [vmem:[%s321 + $0x10] sm:$0xff] %v326
              %v328 = vld [vmem:[%s320 + $0x18] sm:$0xff]
              %329 = vst [vmem:[%s321 + $0x18] sm:$0xff] %v328
              %v330 = vld [vmem:[%s320 + $0x20] sm:$0xff]
              %331 = vst [vmem:[%s321 + $0x20] sm:$0xff] %v330
              %v332 = vld [vmem:[%s320 + $0x28] sm:$0xff]
              %333 = vst [vmem:[%s321 + $0x28] sm:$0xff] %v332
              %v334 = vld [vmem:[%s320 + $0x30] sm:$0xff]
              %335 = vst [vmem:[%s321 + $0x30] sm:$0xff] %v334
              %v336 = vld [vmem:[%s320 + $0x38] sm:$0xff]
              %337 = vst [vmem:[%s321 + $0x38] sm:$0xff] %v336
              %v338 = vld [vmem:[%s320 + $0x40] sm:$0xff]
              %339 = vst [vmem:[%s321 + $0x40] sm:$0xff] %v338
              %v340 = vld [vmem:[%s320 + $0x48] sm:$0xff]
              %341 = vst [vmem:[%s321 + $0x48] sm:$0xff] %v340
              %v342 = vld [vmem:[%s320 + $0x50] sm:$0xff]
              %343 = vst [vmem:[%s321 + $0x50] sm:$0xff] %v342
              %v344 = vld [vmem:[%s320 + $0x58] sm:$0xff]
              %345 = vst [vmem:[%s321 + $0x58] sm:$0xff] %v344
              %v346 = vld [vmem:[%s320 + $0x60] sm:$0xff]
              %347 = vst [vmem:[%s321 + $0x60] sm:$0xff] %v346
              %v348 = vld [vmem:[%s320 + $0x68] sm:$0xff]
              %349 = vst [vmem:[%s321 + $0x68] sm:$0xff] %v348
              %v350 = vld [vmem:[%s320 + $0x70] sm:$0xff]
              %351 = vst [vmem:[%s321 + $0x70] sm:$0xff] %v350
              %v352 = vld [vmem:[%s320 + $0x78] sm:$0xff]
              %353 = vst [vmem:[%s321 + $0x78] sm:$0xff] %v352
              %v354 = vld [vmem:[%s320 + $0x80] sm:$0xff]
              %355 = vst [vmem:[%s321 + $0x80] sm:$0xff] %v354
              %v356 = vld [vmem:[%s320 + $0x88] sm:$0xff]
              %357 = vst [vmem:[%s321 + $0x88] sm:$0xff] %v356
              %v358 = vld [vmem:[%s320 + $0x90] sm:$0xff]
              %359 = vst [vmem:[%s321 + $0x90] sm:$0xff] %v358
              %v360 = vld [vmem:[%s320 + $0x98] sm:$0xff]
              %361 = vst [vmem:[%s321 + $0x98] sm:$0xff] %v360
            $region98: #{_lambda_.1} parent=92 // loop_footer
              %s319 = sadd.s32 1, %s315
            $region99: #{_lambda_.1} parent=92 // loop_footer_branch
              %314 = sbr.rel target = $region95
            $region100: #{_lambda_.1} parent=92 // loop_exit
              _
          $region93: #{_lambda_.1} parent=77 // pred_fallthru
            _
          %p362 = pneg %p310
          // Predicated region
          $region101: #{_lambda_.1} parent=77 // pred_check
            _
          $region102: #{_lambda_.1} parent=77 // pred_check_branch
            %364 = sbr.rel (%p310) target = $region104
          $region103: #{_lambda_.1} parent=77 // pred_region
            %s365 = sand.u32 160, 7
          $region104: #{_lambda_.1} parent=77 // pred_fallthru
            _
        $region78: #{_lambda_.1} parent=73 // pred_fallthru
          _
        // Predicated region
        $region79: #{_lambda_.1} parent=73 // pred_check
          %p295 = pneg %p291
        $region80: #{_lambda_.1} parent=73 // pred_check_branch
          %297 = sbr.rel (%p295) target = $region82
        $region81: #{_lambda_.1} parent=73 // pred_region
          %s298 = sshllo.u32 0, 160
          loop: start=0, step=1, limit=1
          $region83: #{_lambda_.1} parent=81 // loop_pre_header
            _
          $region84: #{_lambda_.1} parent=81 // loop_header
            %s300 = sphi 0, %s304
            %p301 = scmp.ge.s32.totalorder %s300, 1
            %s305 = sphi %s286, %s286
            %s306 = sphi %s288, %s288
          $region85: #{_lambda_.1} parent=81 // loop_header_branch
            %303 = sbr.rel (%p301) target = $region89
          $region86: #{_lambda_.1} parent=81 // loop_body
            %v307 = vld [vmem:[%s305] sm:%s298]
            %308 = vst [vmem:[%s306] sm:%s298] %v307
          $region87: #{_lambda_.1} parent=81 // loop_footer
            %s304 = sadd.s32 1, %s300
          $region88: #{_lambda_.1} parent=81 // loop_footer_branch
            %299 = sbr.rel target = $region84
          $region89: #{_lambda_.1} parent=81 // loop_exit
            _
        $region82: #{_lambda_.1} parent=73 // pred_fallthru
          _
        // Predicated region
        $region105: #{_lambda_.1} parent=73 // pred_check
          _
        $region106: #{_lambda_.1} parent=73 // pred_check_branch
          %368 = sbr.rel (0) target = $region108
        $region107: #{_lambda_.1} parent=73 // pred_region
          %369 = vsyncadd %s289, 2560
        $region108: #{_lambda_.1} parent=73 // pred_fallthru
          _
      $region74: #{_lambda_.1} parent=31 // pred_fallthru
        _
      %s370 = smul.u32 %s189, 160
      %s371 = scalar_lea.vmem [#allocation2], %s370
      %s372 = scalar_lea.sflag [#allocation3], %s189
      %s373 = smul.u32 10, 16
      %s374 = smul.u32 %s373, 1
      %s375 = sshll.u32 %s374, 4
      %376 = dma.done %s372, %s375
      %v377 = vld [vmem:[%s371] sm:$0xff]
      %v378 = vld [vmem:[%s371 + $0x8] sm:$0xff]
      %v379 = vld [vmem:[%s371 + $0x10] sm:$0xff]
      %v380 = vld [vmem:[%s371 + $0x18] sm:$0xff]
      %v381 = vld [vmem:[%s371 + $0x20] sm:$0xff]
      %v382 = vld [vmem:[%s371 + $0x28] sm:$0xff]
      %v383 = vld [vmem:[%s371 + $0x30] sm:$0xff]
      %v384 = vld [vmem:[%s371 + $0x38] sm:$0xff]
      %v385 = vld [vmem:[%s371 + $0x40] sm:$0xff]
      %v386 = vld [vmem:[%s371 + $0x48] sm:$0xff]
      %v387 = vld [vmem:[%s371 + $0x50] sm:$0xff]
      %v388 = vld [vmem:[%s371 + $0x58] sm:$0xff]
      %v389 = vld [vmem:[%s371 + $0x60] sm:$0xff]
      %v390 = vld [vmem:[%s371 + $0x68] sm:$0xff]
      %v391 = vld [vmem:[%s371 + $0x70] sm:$0xff]
      %v392 = vld [vmem:[%s371 + $0x78] sm:$0xff]
      %v393 = vld [vmem:[%s1] sm:$0xff]
      %v394 = vld [vmem:[%s1 + $0x8] sm:$0xff]
      %v395 = vld [vmem:[%s1 + $0x10] sm:$0xff]
      %v396 = vld [vmem:[%s1 + $0x18] sm:$0xff]
      %v397 = vld [vmem:[%s1 + $0x20] sm:$0xff]
      %v398 = vld [vmem:[%s1 + $0x28] sm:$0xff]
      %v399 = vld [vmem:[%s1 + $0x30] sm:$0xff]
      %v400 = vld [vmem:[%s1 + $0x38] sm:$0xff]
      %v401 = vld [vmem:[%s1 + $0x40] sm:$0xff]
      %v402 = vld [vmem:[%s1 + $0x48] sm:$0xff]
      %v403 = vld [vmem:[%s1 + $0x50] sm:$0xff]
      %v404 = vld [vmem:[%s1 + $0x58] sm:$0xff]
      %v405 = vld [vmem:[%s1 + $0x60] sm:$0xff]
      %v406 = vld [vmem:[%s1 + $0x68] sm:$0xff]
      %v407 = vld [vmem:[%s1 + $0x70] sm:$0xff]
      %v408 = vld [vmem:[%s1 + $0x78] sm:$0xff]
      %s409 = scalar_lea.vmem %s371, 16 [#allocation2]
      %v410 = vld [vmem:[%s409] sm:$0xff]
      %v411 = vld [vmem:[%s409 + $0x8] sm:$0xff]
      %v412 = vld [vmem:[%s409 + $0x10] sm:$0xff]
      %v413 = vld [vmem:[%s409 + $0x18] sm:$0xff]
      %v414 = vld [vmem:[%s409 + $0x20] sm:$0xff]
      %v415 = vld [vmem:[%s409 + $0x28] sm:$0xff]
      %v416 = vld [vmem:[%s409 + $0x30] sm:$0xff]
      %v417 = vld [vmem:[%s409 + $0x38] sm:$0xff]
      %v418 = vld [vmem:[%s409 + $0x40] sm:$0xff]
      %v419 = vld [vmem:[%s409 + $0x48] sm:$0xff]
      %v420 = vld [vmem:[%s409 + $0x50] sm:$0xff]
      %v421 = vld [vmem:[%s409 + $0x58] sm:$0xff]
      %v422 = vld [vmem:[%s409 + $0x60] sm:$0xff]
      %v423 = vld [vmem:[%s409 + $0x68] sm:$0xff]
      %v424 = vld [vmem:[%s409 + $0x70] sm:$0xff]
      %v425 = vld [vmem:[%s409 + $0x78] sm:$0xff]
      %s426 = scalar_lea.vmem %s1, 128
      %v427 = vld [vmem:[%s426] sm:$0xff]
      %v428 = vld [vmem:[%s426 + $0x8] sm:$0xff]
      %v429 = vld [vmem:[%s426 + $0x10] sm:$0xff]
      %v430 = vld [vmem:[%s426 + $0x18] sm:$0xff]
      %v431 = vld [vmem:[%s426 + $0x20] sm:$0xff]
      %v432 = vld [vmem:[%s426 + $0x28] sm:$0xff]
      %v433 = vld [vmem:[%s426 + $0x30] sm:$0xff]
      %v434 = vld [vmem:[%s426 + $0x38] sm:$0xff]
      %v435 = vld [vmem:[%s426 + $0x40] sm:$0xff]
      %v436 = vld [vmem:[%s426 + $0x48] sm:$0xff]
      %v437 = vld [vmem:[%s426 + $0x50] sm:$0xff]
      %v438 = vld [vmem:[%s426 + $0x58] sm:$0xff]
      %v439 = vld [vmem:[%s426 + $0x60] sm:$0xff]
      %v440 = vld [vmem:[%s426 + $0x68] sm:$0xff]
      %v441 = vld [vmem:[%s426 + $0x70] sm:$0xff]
      %v442 = vld [vmem:[%s426 + $0x78] sm:$0xff]
      %443 = vmatprep.subr.mxu0 0.0
      %444 = vmatpush1.msra.mxu0 %v427
      %445 = vmatprep.subr.mxu0 0.0
      %446 = vmatpush1.msra.mxu0 %v428
      %447 = vmatprep.subr.mxu0 0.0
      %448 = vmatpush1.msra.mxu0 %v429
      %449 = vmatprep.subr.mxu0 0.0
      %450 = vmatpush1.msra.mxu0 %v430
      %451 = vmatprep.subr.mxu0 0.0
      %452 = vmatpush1.msra.mxu0 %v431
      %453 = vmatprep.subr.mxu0 0.0
      %454 = vmatpush1.msra.mxu0 %v432
      %455 = vmatprep.subr.mxu0 0.0
      %456 = vmatpush1.msra.mxu0 %v433
      %457 = vmatprep.subr.mxu0 0.0
      %458 = vmatpush1.msra.mxu0 %v434
      %459 = vmatprep.subr.mxu0 0.0
      %460 = vmatpush1.msra.mxu0 %v435
      %461 = vmatprep.subr.mxu0 0.0
      %462 = vmatpush1.msra.mxu0 %v436
      %463 = vmatprep.subr.mxu0 0.0
      %464 = vmatpush1.msra.mxu0 %v437
      %465 = vmatprep.subr.mxu0 0.0
      %466 = vmatpush1.msra.mxu0 %v438
      %467 = vmatprep.subr.mxu0 0.0
      %468 = vmatpush1.msra.mxu0 %v439
      %469 = vmatprep.subr.mxu0 0.0
      %470 = vmatpush1.msra.mxu0 %v440
      %471 = vmatprep.subr.mxu0 0.0
      %472 = vmatpush1.msra.mxu0 %v441
      %473 = vmatprep.subr.mxu0 0.0
      %474 = vmatpush1.msra.mxu0 %v442
      %475 = vmatprep.subr.mxu0 0.0
      %476 = vmatpush1.msra.mxu0 0.0
      %477 = vmatprep.subr.mxu0 0.0
      %478 = vmatpush1.msra.mxu0 0.0
      %479 = vmatprep.subr.mxu0 0.0
      %480 = vmatpush1.msra.mxu0 0.0
      %481 = vmatprep.subr.mxu0 0.0
      %482 = vmatpush1.msra.mxu0 0.0
      %483 = vmatprep.subr.mxu0 0.0
      %484 = vmatpush1.msra.mxu0 0.0
      %485 = vmatprep.subr.mxu0 0.0
      %486 = vmatpush1.msra.mxu0 0.0
      %487 = vmatprep.subr.mxu0 0.0
      %488 = vmatpush1.msra.mxu0 0.0
      %489 = vmatprep.subr.mxu0 0.0
      %490 = vmatpush1.msra.mxu0 0.0
      %491 = vmatprep.subr.mxu0 0.0
      %492 = vmatpush1.msra.mxu0 0.0
      %493 = vmatprep.subr.mxu0 0.0
      %494 = vmatpush1.msra.mxu0 0.0
      %495 = vmatprep.subr.mxu0 0.0
      %496 = vmatpush1.msra.mxu0 0.0
      %497 = vmatprep.subr.mxu0 0.0
      %498 = vmatpush1.msra.mxu0 0.0
      %499 = vmatprep.subr.mxu0 0.0
      %500 = vmatpush1.msra.mxu0 0.0
      %501 = vmatprep.subr.mxu0 0.0
      %502 = vmatpush1.msra.mxu0 0.0
      %503 = vmatprep.subr.mxu0 0.0
      %504 = vmatpush1.msra.mxu0 0.0
      %505 = vmatprep.subr.mxu0 0.0
      %506 = vmatpush1.msra.mxu0 0.0
      %507 = vmatprep.mubr.f32.mxu0 0.0
      %508 = vmatmul.mubr.f32.gmra.mrb[0].mxu0 %v410
      %v509 = vpop.f32.mrb[0].mxu0
      %v510 = vadd.f32 0.0, %v509
      %v511 = vpop.f32.mrb[0].mxu0
      %512 = vmatprep.mubr.f32.mxu0 0.0
      %513 = vmatmul.mubr.f32.gmra.mrb[0].mxu0 %v411
      %v514 = vpop.f32.mrb[0].mxu0
      %v515 = vadd.f32 0.0, %v514
      %v516 = vpop.f32.mrb[0].mxu0
      %517 = vmatprep.mubr.f32.mxu0 0.0
      %518 = vmatmul.mubr.f32.gmra.mrb[0].mxu0 %v412
      %v519 = vpop.f32.mrb[0].mxu0
      %v520 = vadd.f32 0.0, %v519
      %v521 = vpop.f32.mrb[0].mxu0
      %522 = vmatprep.mubr.f32.mxu0 0.0
      %523 = vmatmul.mubr.f32.gmra.mrb[0].mxu0 %v413
      %v524 = vpop.f32.mrb[0].mxu0
      %v525 = vadd.f32 0.0, %v524
      %v526 = vpop.f32.mrb[0].mxu0
      %527 = vmatprep.mubr.f32.mxu0 0.0
      %528 = vmatmul.mubr.f32.gmra.mrb[0].mxu0 %v414
      %v529 = vpop.f32.mrb[0].mxu0
      %v530 = vadd.f32 0.0, %v529
      %v531 = vpop.f32.mrb[0].mxu0
      %532 = vmatprep.mubr.f32.mxu0 0.0
      %533 = vmatmul.mubr.f32.gmra.mrb[0].mxu0 %v415
      %v534 = vpop.f32.mrb[0].mxu0
      %v535 = vadd.f32 0.0, %v534
      %v536 = vpop.f32.mrb[0].mxu0
      %537 = vmatprep.mubr.f32.mxu0 0.0
      %538 = vmatmul.mubr.f32.gmra.mrb[0].mxu0 %v416
      %v539 = vpop.f32.mrb[0].mxu0
      %v540 = vadd.f32 0.0, %v539
      %v541 = vpop.f32.mrb[0].mxu0
      %542 = vmatprep.mubr.f32.mxu0 0.0
      %543 = vmatmul.mubr.f32.gmra.mrb[0].mxu0 %v417
      %v544 = vpop.f32.mrb[0].mxu0
      %v545 = vadd.f32 0.0, %v544
      %v546 = vpop.f32.mrb[0].mxu0
      %547 = vmatprep.mubr.f32.mxu0 0.0
      %548 = vmatmul.mubr.f32.gmra.mrb[0].mxu0 %v418
      %v549 = vpop.f32.mrb[0].mxu0
      %v550 = vadd.f32 0.0, %v549
      %v551 = vpop.f32.mrb[0].mxu0
      %552 = vmatprep.mubr.f32.mxu0 0.0
      %553 = vmatmul.mubr.f32.gmra.mrb[0].mxu0 %v419
      %v554 = vpop.f32.mrb[0].mxu0
      %v555 = vadd.f32 0.0, %v554
      %v556 = vpop.f32.mrb[0].mxu0
      %557 = vmatprep.mubr.f32.mxu0 0.0
      %558 = vmatmul.mubr.f32.gmra.mrb[0].mxu0 %v420
      %v559 = vpop.f32.mrb[0].mxu0
      %v560 = vadd.f32 0.0, %v559
      %v561 = vpop.f32.mrb[0].mxu0
      %562 = vmatprep.mubr.f32.mxu0 0.0
      %563 = vmatmul.mubr.f32.gmra.mrb[0].mxu0 %v421
      %v564 = vpop.f32.mrb[0].mxu0
      %v565 = vadd.f32 0.0, %v564
      %v566 = vpop.f32.mrb[0].mxu0
      %567 = vmatprep.mubr.f32.mxu0 0.0
      %568 = vmatmul.mubr.f32.gmra.mrb[0].mxu0 %v422
      %v569 = vpop.f32.mrb[0].mxu0
      %v570 = vadd.f32 0.0, %v569
      %v571 = vpop.f32.mrb[0].mxu0
      %572 = vmatprep.mubr.f32.mxu0 0.0
      %573 = vmatmul.mubr.f32.gmra.mrb[0].mxu0 %v423
      %v574 = vpop.f32.mrb[0].mxu0
      %v575 = vadd.f32 0.0, %v574
      %v576 = vpop.f32.mrb[0].mxu0
      %577 = vmatprep.mubr.f32.mxu0 0.0
      %578 = vmatmul.mubr.f32.gmra.mrb[0].mxu0 %v424
      %v579 = vpop.f32.mrb[0].mxu0
      %v580 = vadd.f32 0.0, %v579
      %v581 = vpop.f32.mrb[0].mxu0
      %582 = vmatprep.mubr.f32.mxu0 0.0
      %583 = vmatmul.mubr.f32.gmra.mrb[0].mxu0 %v425
      %v584 = vpop.f32.mrb[0].mxu0
      %v585 = vadd.f32 0.0, %v584
      %v586 = vpop.f32.mrb[0].mxu0
      %587 = vdwg.mxu0
      %588 = vmatprep.subr.mxu0 0.0
      %589 = vmatpush1.msra.mxu0 %v393
      %590 = vmatprep.subr.mxu0 0.0
      %591 = vmatpush1.msra.mxu0 %v394
      %592 = vmatprep.subr.mxu0 0.0
      %593 = vmatpush1.msra.mxu0 %v395
      %594 = vmatprep.subr.mxu0 0.0
      %595 = vmatpush1.msra.mxu0 %v396
      %596 = vmatprep.subr.mxu0 0.0
      %597 = vmatpush1.msra.mxu0 %v397
      %598 = vmatprep.subr.mxu0 0.0
      %599 = vmatpush1.msra.mxu0 %v398
      %600 = vmatprep.subr.mxu0 0.0
      %601 = vmatpush1.msra.mxu0 %v399
      %602 = vmatprep.subr.mxu0 0.0
      %603 = vmatpush1.msra.mxu0 %v400
      %604 = vmatprep.subr.mxu0 0.0
      %605 = vmatpush1.msra.mxu0 %v401
      %606 = vmatprep.subr.mxu0 0.0
      %607 = vmatpush1.msra.mxu0 %v402
      %608 = vmatprep.subr.mxu0 0.0
      %609 = vmatpush1.msra.mxu0 %v403
      %610 = vmatprep.subr.mxu0 0.0
      %611 = vmatpush1.msra.mxu0 %v404
      %612 = vmatprep.subr.mxu0 0.0
      %613 = vmatpush1.msra.mxu0 %v405
      %614 = vmatprep.subr.mxu0 0.0
      %615 = vmatpush1.msra.mxu0 %v406
      %616 = vmatprep.subr.mxu0 0.0
      %617 = vmatpush1.msra.mxu0 %v407
      %618 = vmatprep.subr.mxu0 0.0
      %619 = vmatpush1.msra.mxu0 %v408
      %620 = vmatprep.subr.mxu0 0.0
      %621 = vmatpush1.msra.mxu0 0.0
      %622 = vmatprep.subr.mxu0 0.0
      %623 = vmatpush1.msra.mxu0 0.0
      %624 = vmatprep.subr.mxu0 0.0
      %625 = vmatpush1.msra.mxu0 0.0
      %626 = vmatprep.subr.mxu0 0.0
      %627 = vmatpush1.msra.mxu0 0.0
      %628 = vmatprep.subr.mxu0 0.0
      %629 = vmatpush1.msra.mxu0 0.0
      %630 = vmatprep.subr.mxu0 0.0
      %631 = vmatpush1.msra.mxu0 0.0
      %632 = vmatprep.subr.mxu0 0.0
      %633 = vmatpush1.msra.mxu0 0.0
      %634 = vmatprep.subr.mxu0 0.0
      %635 = vmatpush1.msra.mxu0 0.0
      %636 = vmatprep.subr.mxu0 0.0
      %637 = vmatpush1.msra.mxu0 0.0
      %638 = vmatprep.subr.mxu0 0.0
      %639 = vmatpush1.msra.mxu0 0.0
      %640 = vmatprep.subr.mxu0 0.0
      %641 = vmatpush1.msra.mxu0 0.0
      %642 = vmatprep.subr.mxu0 0.0
      %643 = vmatpush1.msra.mxu0 0.0
      %644 = vmatprep.subr.mxu0 0.0
      %645 = vmatpush1.msra.mxu0 0.0
      %646 = vmatprep.subr.mxu0 0.0
      %647 = vmatpush1.msra.mxu0 0.0
      %648 = vmatprep.subr.mxu0 0.0
      %649 = vmatpush1.msra.mxu0 0.0
      %650 = vmatprep.subr.mxu0 0.0
      %651 = vmatpush1.msra.mxu0 0.0
      %652 = vmatprep.mubr.f32.mxu0 0.0
      %653 = vmatmul.mubr.f32.gmra.mrb[0].mxu0 %v377
      %v654 = vpop.f32.mrb[0].mxu0
      %v655 = vadd.f32 %v510, %v654
      %v656 = vpop.f32.mrb[0].mxu0
      %657 = vmatprep.mubr.f32.mxu0 0.0
      %658 = vmatmul.mubr.f32.gmra.mrb[0].mxu0 %v378
      %v659 = vpop.f32.mrb[0].mxu0
      %v660 = vadd.f32 %v515, %v659
      %v661 = vpop.f32.mrb[0].mxu0
      %662 = vmatprep.mubr.f32.mxu0 0.0
      %663 = vmatmul.mubr.f32.gmra.mrb[0].mxu0 %v379
      %v664 = vpop.f32.mrb[0].mxu0
      %v665 = vadd.f32 %v520, %v664
      %v666 = vpop.f32.mrb[0].mxu0
      %667 = vmatprep.mubr.f32.mxu0 0.0
      %668 = vmatmul.mubr.f32.gmra.mrb[0].mxu0 %v380
      %v669 = vpop.f32.mrb[0].mxu0
      %v670 = vadd.f32 %v525, %v669
      %v671 = vpop.f32.mrb[0].mxu0
      %672 = vmatprep.mubr.f32.mxu0 0.0
      %673 = vmatmul.mubr.f32.gmra.mrb[0].mxu0 %v381
      %v674 = vpop.f32.mrb[0].mxu0
      %v675 = vadd.f32 %v530, %v674
      %v676 = vpop.f32.mrb[0].mxu0
      %677 = vmatprep.mubr.f32.mxu0 0.0
      %678 = vmatmul.mubr.f32.gmra.mrb[0].mxu0 %v382
      %v679 = vpop.f32.mrb[0].mxu0
      %v680 = vadd.f32 %v535, %v679
      %v681 = vpop.f32.mrb[0].mxu0
      %682 = vmatprep.mubr.f32.mxu0 0.0
      %683 = vmatmul.mubr.f32.gmra.mrb[0].mxu0 %v383
      %v684 = vpop.f32.mrb[0].mxu0
      %v685 = vadd.f32 %v540, %v684
      %v686 = vpop.f32.mrb[0].mxu0
      %687 = vmatprep.mubr.f32.mxu0 0.0
      %688 = vmatmul.mubr.f32.gmra.mrb[0].mxu0 %v384
      %v689 = vpop.f32.mrb[0].mxu0
      %v690 = vadd.f32 %v545, %v689
      %v691 = vpop.f32.mrb[0].mxu0
      %692 = vmatprep.mubr.f32.mxu0 0.0
      %693 = vmatmul.mubr.f32.gmra.mrb[0].mxu0 %v385
      %v694 = vpop.f32.mrb[0].mxu0
      %v695 = vadd.f32 %v550, %v694
      %v696 = vpop.f32.mrb[0].mxu0
      %697 = vmatprep.mubr.f32.mxu0 0.0
      %698 = vmatmul.mubr.f32.gmra.mrb[0].mxu0 %v386
      %v699 = vpop.f32.mrb[0].mxu0
      %v700 = vadd.f32 %v555, %v699
      %v701 = vpop.f32.mrb[0].mxu0
      %702 = vmatprep.mubr.f32.mxu0 0.0
      %703 = vmatmul.mubr.f32.gmra.mrb[0].mxu0 %v387
      %v704 = vpop.f32.mrb[0].mxu0
      %v705 = vadd.f32 %v560, %v704
      %v706 = vpop.f32.mrb[0].mxu0
      %707 = vmatprep.mubr.f32.mxu0 0.0
      %708 = vmatmul.mubr.f32.gmra.mrb[0].mxu0 %v388
      %v709 = vpop.f32.mrb[0].mxu0
      %v710 = vadd.f32 %v565, %v709
      %v711 = vpop.f32.mrb[0].mxu0
      %712 = vmatprep.mubr.f32.mxu0 0.0
      %713 = vmatmul.mubr.f32.gmra.mrb[0].mxu0 %v389
      %v714 = vpop.f32.mrb[0].mxu0
      %v715 = vadd.f32 %v570, %v714
      %v716 = vpop.f32.mrb[0].mxu0
      %717 = vmatprep.mubr.f32.mxu0 0.0
      %718 = vmatmul.mubr.f32.gmra.mrb[0].mxu0 %v390
      %v719 = vpop.f32.mrb[0].mxu0
      %v720 = vadd.f32 %v575, %v719
      %v721 = vpop.f32.mrb[0].mxu0
      %722 = vmatprep.mubr.f32.mxu0 0.0
      %723 = vmatmul.mubr.f32.gmra.mrb[0].mxu0 %v391
      %v724 = vpop.f32.mrb[0].mxu0
      %v725 = vadd.f32 %v580, %v724
      %v726 = vpop.f32.mrb[0].mxu0
      %727 = vmatprep.mubr.f32.mxu0 0.0
      %728 = vmatmul.mubr.f32.gmra.mrb[0].mxu0 %v392
      %v729 = vpop.f32.mrb[0].mxu0
      %v730 = vadd.f32 %v585, %v729
      %v731 = vpop.f32.mrb[0].mxu0
      %732 = vdwg.mxu0
      %s733 = scalar_lea.vmem %s371, 32 [#allocation2]
      %v734 = vld [vmem:[%s733] sm:$0xff]
      %v735 = vld [vmem:[%s733 + $0x8] sm:$0xff]
      %v736 = vld [vmem:[%s733 + $0x10] sm:$0xff]
      %v737 = vld [vmem:[%s733 + $0x18] sm:$0xff]
      %v738 = vld [vmem:[%s733 + $0x20] sm:$0xff]
      %v739 = vld [vmem:[%s733 + $0x28] sm:$0xff]
      %v740 = vld [vmem:[%s733 + $0x30] sm:$0xff]
      %v741 = vld [vmem:[%s733 + $0x38] sm:$0xff]
      %v742 = vld [vmem:[%s733 + $0x40] sm:$0xff]
      %v743 = vld [vmem:[%s733 + $0x48] sm:$0xff]
      %v744 = vld [vmem:[%s733 + $0x50] sm:$0xff]
      %v745 = vld [vmem:[%s733 + $0x58] sm:$0xff]
      %v746 = vld [vmem:[%s733 + $0x60] sm:$0xff]
      %v747 = vld [vmem:[%s733 + $0x68] sm:$0xff]
      %v748 = vld [vmem:[%s733 + $0x70] sm:$0xff]
      %v749 = vld [vmem:[%s733 + $0x78] sm:$0xff]
      %s750 = scalar_lea.vmem %s1, 256
      %v751 = vld [vmem:[%s750] sm:$0xff]
      %v752 = vld [vmem:[%s750 + $0x8] sm:$0xff]
      %v753 = vld [vmem:[%s750 + $0x10] sm:$0xff]
      %v754 = vld [vmem:[%s750 + $0x18] sm:$0xff]
      %v755 = vld [vmem:[%s750 + $0x20] sm:$0xff]
      %v756 = vld [vmem:[%s750 + $0x28] sm:$0xff]
      %v757 = vld [vmem:[%s750 + $0x30] sm:$0xff]
      %v758 = vld [vmem:[%s750 + $0x38] sm:$0xff]
      %v759 = vld [vmem:[%s750 + $0x40] sm:$0xff]
      %v760 = vld [vmem:[%s750 + $0x48] sm:$0xff]
      %v761 = vld [vmem:[%s750 + $0x50] sm:$0xff]
      %v762 = vld [vmem:[%s750 + $0x58] sm:$0xff]
      %v763 = vld [vmem:[%s750 + $0x60] sm:$0xff]
      %v764 = vld [vmem:[%s750 + $0x68] sm:$0xff]
      %v765 = vld [vmem:[%s750 + $0x70] sm:$0xff]
      %v766 = vld [vmem:[%s750 + $0x78] sm:$0xff]
      %767 = vmatprep.subr.mxu0 0.0
      %768 = vmatpush1.msra.mxu0 %v751
      %769 = vmatprep.subr.mxu0 0.0
      %770 = vmatpush1.msra.mxu0 %v752
      %771 = vmatprep.subr.mxu0 0.0
      %772 = vmatpush1.msra.mxu0 %v753
      %773 = vmatprep.subr.mxu0 0.0
      %774 = vmatpush1.msra.mxu0 %v754
      %775 = vmatprep.subr.mxu0 0.0
      %776 = vmatpush1.msra.mxu0 %v755
      %777 = vmatprep.subr.mxu0 0.0
      %778 = vmatpush1.msra.mxu0 %v756
      %779 = vmatprep.subr.mxu0 0.0
      %780 = vmatpush1.msra.mxu0 %v757
      %781 = vmatprep.subr.mxu0 0.0
      %782 = vmatpush1.msra.mxu0 %v758
      %783 = vmatprep.subr.mxu0 0.0
      %784 = vmatpush1.msra.mxu0 %v759
      %785 = vmatprep.subr.mxu0 0.0
      %786 = vmatpush1.msra.mxu0 %v760
      %787 = vmatprep.subr.mxu0 0.0
      %788 = vmatpush1.msra.mxu0 %v761
      %789 = vmatprep.subr.mxu0 0.0
      %790 = vmatpush1.msra.mxu0 %v762
      %791 = vmatprep.subr.mxu0 0.0
      %792 = vmatpush1.msra.mxu0 %v763
      %793 = vmatprep.subr.mxu0 0.0
      %794 = vmatpush1.msra.mxu0 %v764
      %795 = vmatprep.subr.mxu0 0.0
      %796 = vmatpush1.msra.mxu0 %v765
      %797 = vmatprep.subr.mxu0 0.0
      %798 = vmatpush1.msra.mxu0 %v766
      %799 = vmatprep.subr.mxu0 0.0
      %800 = vmatpush1.msra.mxu0 0.0
      %801 = vmatprep.subr.mxu0 0.0
      %802 = vmatpush1.msra.mxu0 0.0
      %803 = vmatprep.subr.mxu0 0.0
      %804 = vmatpush1.msra.mxu0 0.0
      %805 = vmatprep.subr.mxu0 0.0
      %806 = vmatpush1.msra.mxu0 0.0
      %807 = vmatprep.subr.mxu0 0.0
      %808 = vmatpush1.msra.mxu0 0.0
      %809 = vmatprep.subr.mxu0 0.0
      %810 = vmatpush1.msra.mxu0 0.0
      %811 = vmatprep.subr.mxu0 0.0
      %812 = vmatpush1.msra.mxu0 0.0
      %813 = vmatprep.subr.mxu0 0.0
      %814 = vmatpush1.msra.mxu0 0.0
      %815 = vmatprep.subr.mxu0 0.0
      %816 = vmatpush1.msra.mxu0 0.0
      %817 = vmatprep.subr.mxu0 0.0
      %818 = vmatpush1.msra.mxu0 0.0
      %819 = vmatprep.subr.mxu0 0.0
      %820 = vmatpush1.msra.mxu0 0.0
      %821 = vmatprep.subr.mxu0 0.0
      %822 = vmatpush1.msra.mxu0 0.0
      %823 = vmatprep.subr.mxu0 0.0
      %824 = vmatpush1.msra.mxu0 0.0
      %825 = vmatprep.subr.mxu0 0.0
      %826 = vmatpush1.msra.mxu0 0.0
      %827 = vmatprep.subr.mxu0 0.0
      %828 = vmatpush1.msra.mxu0 0.0
      %829 = vmatprep.subr.mxu0 0.0
      %830 = vmatpush1.msra.mxu0 0.0
      %831 = vmatprep.mubr.f32.mxu0 0.0
      %832 = vmatmul.mubr.f32.gmra.mrb[0].mxu0 %v734
      %v833 = vpop.f32.mrb[0].mxu0
      %v834 = vadd.f32 0.0, %v833
      %v835 = vpop.f32.mrb[0].mxu0
      %836 = vmatprep.mubr.f32.mxu0 0.0
      %837 = vmatmul.mubr.f32.gmra.mrb[0].mxu0 %v735
      %v838 = vpop.f32.mrb[0].mxu0
      %v839 = vadd.f32 0.0, %v838
      %v840 = vpop.f32.mrb[0].mxu0
      %841 = vmatprep.mubr.f32.mxu0 0.0
      %842 = vmatmul.mubr.f32.gmra.mrb[0].mxu0 %v736
      %v843 = vpop.f32.mrb[0].mxu0
      %v844 = vadd.f32 0.0, %v843
      %v845 = vpop.f32.mrb[0].mxu0
      %846 = vmatprep.mubr.f32.mxu0 0.0
      %847 = vmatmul.mubr.f32.gmra.mrb[0].mxu0 %v737
      %v848 = vpop.f32.mrb[0].mxu0
      %v849 = vadd.f32 0.0, %v848
      %v850 = vpop.f32.mrb[0].mxu0
      %851 = vmatprep.mubr.f32.mxu0 0.0
      %852 = vmatmul.mubr.f32.gmra.mrb[0].mxu0 %v738
      %v853 = vpop.f32.mrb[0].mxu0
      %v854 = vadd.f32 0.0, %v853
      %v855 = vpop.f32.mrb[0].mxu0
      %856 = vmatprep.mubr.f32.mxu0 0.0
      %857 = vmatmul.mubr.f32.gmra.mrb[0].mxu0 %v739
      %v858 = vpop.f32.mrb[0].mxu0
      %v859 = vadd.f32 0.0, %v858
      %v860 = vpop.f32.mrb[0].mxu0
      %861 = vmatprep.mubr.f32.mxu0 0.0
      %862 = vmatmul.mubr.f32.gmra.mrb[0].mxu0 %v740
      %v863 = vpop.f32.mrb[0].mxu0
      %v864 = vadd.f32 0.0, %v863
      %v865 = vpop.f32.mrb[0].mxu0
      %866 = vmatprep.mubr.f32.mxu0 0.0
      %867 = vmatmul.mubr.f32.gmra.mrb[0].mxu0 %v741
      %v868 = vpop.f32.mrb[0].mxu0
      %v869 = vadd.f32 0.0, %v868
      %v870 = vpop.f32.mrb[0].mxu0
      %871 = vmatprep.mubr.f32.mxu0 0.0
      %872 = vmatmul.mubr.f32.gmra.mrb[0].mxu0 %v742
      %v873 = vpop.f32.mrb[0].mxu0
      %v874 = vadd.f32 0.0, %v873
      %v875 = vpop.f32.mrb[0].mxu0
      %876 = vmatprep.mubr.f32.mxu0 0.0
      %877 = vmatmul.mubr.f32.gmra.mrb[0].mxu0 %v743
      %v878 = vpop.f32.mrb[0].mxu0
      %v879 = vadd.f32 0.0, %v878
      %v880 = vpop.f32.mrb[0].mxu0
      %881 = vmatprep.mubr.f32.mxu0 0.0
      %882 = vmatmul.mubr.f32.gmra.mrb[0].mxu0 %v744
      %v883 = vpop.f32.mrb[0].mxu0
      %v884 = vadd.f32 0.0, %v883
      %v885 = vpop.f32.mrb[0].mxu0
      %886 = vmatprep.mubr.f32.mxu0 0.0
      %887 = vmatmul.mubr.f32.gmra.mrb[0].mxu0 %v745
      %v888 = vpop.f32.mrb[0].mxu0
      %v889 = vadd.f32 0.0, %v888
      %v890 = vpop.f32.mrb[0].mxu0
      %891 = vmatprep.mubr.f32.mxu0 0.0
      %892 = vmatmul.mubr.f32.gmra.mrb[0].mxu0 %v746
      %v893 = vpop.f32.mrb[0].mxu0
      %v894 = vadd.f32 0.0, %v893
      %v895 = vpop.f32.mrb[0].mxu0
      %896 = vmatprep.mubr.f32.mxu0 0.0
      %897 = vmatmul.mubr.f32.gmra.mrb[0].mxu0 %v747
      %v898 = vpop.f32.mrb[0].mxu0
      %v899 = vadd.f32 0.0, %v898
      %v900 = vpop.f32.mrb[0].mxu0
      %901 = vmatprep.mubr.f32.mxu0 0.0
      %902 = vmatmul.mubr.f32.gmra.mrb[0].mxu0 %v748
      %v903 = vpop.f32.mrb[0].mxu0
      %v904 = vadd.f32 0.0, %v903
      %v905 = vpop.f32.mrb[0].mxu0
      %906 = vmatprep.mubr.f32.mxu0 0.0
      %907 = vmatmul.mubr.f32.gmra.mrb[0].mxu0 %v749
      %v908 = vpop.f32.mrb[0].mxu0
      %v909 = vadd.f32 0.0, %v908
      %v910 = vpop.f32.mrb[0].mxu0
      %911 = vdwg.mxu0
      %v912 = vadd.f32 %v655, %v834
      %v913 = vadd.f32 %v660, %v839
      %v914 = vadd.f32 %v665, %v844
      %v915 = vadd.f32 %v670, %v849
      %v916 = vadd.f32 %v675, %v854
      %v917 = vadd.f32 %v680, %v859
      %v918 = vadd.f32 %v685, %v864
      %v919 = vadd.f32 %v690, %v869
      %v920 = vadd.f32 %v695, %v874
      %v921 = vadd.f32 %v700, %v879
      %v922 = vadd.f32 %v705, %v884
      %v923 = vadd.f32 %v710, %v889
      %v924 = vadd.f32 %v715, %v894
      %v925 = vadd.f32 %v720, %v899
      %v926 = vadd.f32 %v725, %v904
      %v927 = vadd.f32 %v730, %v909
      %v928 = vld [vmem:[%s2] sm:$0x1]
      %v930 = vlaneseq
      %v931 = vshrl.u32 %v930, 7
      %v932 = vsub.s32 0, %v931
      %v933 = vrot.slane %v928, %v932
      %v935 = vadd.f32 %v912, %v933
      %v936 = vadd.f32 %v913, %v933
      %v937 = vadd.f32 %v914, %v933
      %v938 = vadd.f32 %v915, %v933
      %v939 = vadd.f32 %v916, %v933
      %v940 = vadd.f32 %v917, %v933
      %v941 = vadd.f32 %v918, %v933
      %v942 = vadd.f32 %v919, %v933
      %v943 = vadd.f32 %v920, %v933
      %v944 = vadd.f32 %v921, %v933
      %v945 = vadd.f32 %v922, %v933
      %v946 = vadd.f32 %v923, %v933
      %v947 = vadd.f32 %v924, %v933
      %v948 = vadd.f32 %v925, %v933
      %v949 = vadd.f32 %v926, %v933
      %v950 = vadd.f32 %v927, %v933
      %s951 = sld [smem:[#allocation4]]
      %vm952 = vcmp.ge.f32.partialorder %v935, 0.0
      %vm953 = vcmp.ge.f32.partialorder %v936, 0.0
      %vm954 = vcmp.ge.f32.partialorder %v937, 0.0
      %vm955 = vcmp.ge.f32.partialorder %v938, 0.0
      %vm956 = vcmp.ge.f32.partialorder %v939, 0.0
      %vm957 = vcmp.ge.f32.partialorder %v940, 0.0
      %vm958 = vcmp.ge.f32.partialorder %v941, 0.0
      %vm959 = vcmp.ge.f32.partialorder %v942, 0.0
      %vm960 = vcmp.ge.f32.partialorder %v943, 0.0
      %vm961 = vcmp.ge.f32.partialorder %v944, 0.0
      %vm962 = vcmp.ge.f32.partialorder %v945, 0.0
      %vm963 = vcmp.ge.f32.partialorder %v946, 0.0
      %vm964 = vcmp.ge.f32.partialorder %v947, 0.0
      %vm965 = vcmp.ge.f32.partialorder %v948, 0.0
      %vm966 = vcmp.ge.f32.partialorder %v949, 0.0
      %vm967 = vcmp.ge.f32.partialorder %v950, 0.0
      %v968 = vstv %s951
      %v969 = vmul.f32 %v968, %v935
      %v970 = vmul.f32 %v968, %v936
      %v971 = vmul.f32 %v968, %v937
      %v972 = vmul.f32 %v968, %v938
      %v973 = vmul.f32 %v968, %v939
      %v974 = vmul.f32 %v968, %v940
      %v975 = vmul.f32 %v968, %v941
      %v976 = vmul.f32 %v968, %v942
      %v977 = vmul.f32 %v968, %v943
      %v978 = vmul.f32 %v968, %v944
      %v979 = vmul.f32 %v968, %v945
      %v980 = vmul.f32 %v968, %v946
      %v981 = vmul.f32 %v968, %v947
      %v982 = vmul.f32 %v968, %v948
      %v983 = vmul.f32 %v968, %v949
      %v984 = vmul.f32 %v968, %v950
      %v985 = vsel %vm952, %v935, %v969
      %v986 = vsel %vm953, %v936, %v970
      %v987 = vsel %vm954, %v937, %v971
      %v988 = vsel %vm955, %v938, %v972
      %v989 = vsel %vm956, %v939, %v973
      %v990 = vsel %vm957, %v940, %v974
      %v991 = vsel %vm958, %v941, %v975
      %v992 = vsel %vm959, %v942, %v976
      %v993 = vsel %vm960, %v943, %v977
      %v994 = vsel %vm961, %v944, %v978
      %v995 = vsel %vm962, %v945, %v979
      %v996 = vsel %vm963, %v946, %v980
      %v997 = vsel %vm964, %v947, %v981
      %v998 = vsel %vm965, %v948, %v982
      %v999 = vsel %vm966, %v949, %v983
      %v1000 = vsel %vm967, %v950, %v984
      %1001 = vst [vmem:[%s176] sm:$0xff] %v985
      %1002 = vst [vmem:[%s176 + $0x8] sm:$0xff] %v986
      %1003 = vst [vmem:[%s176 + $0x10] sm:$0xff] %v987
      %1004 = vst [vmem:[%s176 + $0x18] sm:$0xff] %v988
      %1005 = vst [vmem:[%s176 + $0x20] sm:$0xff] %v989
      %1006 = vst [vmem:[%s176 + $0x28] sm:$0xff] %v990
      %1007 = vst [vmem:[%s176 + $0x30] sm:$0xff] %v991
      %1008 = vst [vmem:[%s176 + $0x38] sm:$0xff] %v992
      %1009 = vst [vmem:[%s176 + $0x40] sm:$0xff] %v993
      %1010 = vst [vmem:[%s176 + $0x48] sm:$0xff] %v994
      %1011 = vst [vmem:[%s176 + $0x50] sm:$0xff] %v995
      %1012 = vst [vmem:[%s176 + $0x58] sm:$0xff] %v996
      %1013 = vst [vmem:[%s176 + $0x60] sm:$0xff] %v997
      %1014 = vst [vmem:[%s176 + $0x68] sm:$0xff] %v998
      %1015 = vst [vmem:[%s176 + $0x70] sm:$0xff] %v999
      %1016 = vst [vmem:[%s176 + $0x78] sm:$0xff] %v1000
      %s1017 = smul.u32 8, %s21
      %p1018 = scmp.lt.s32.totalorder %s20, 1
      %s1019 = scalar_select %p1018, %s20, 1
      %p1020 = scmp.lt.s32.totalorder %s1017, 15
      %s1021 = scalar_select %p1020, %s1017, 15
      %s1022 = smul.addr %s1021, 2
      %s1023 = smul.addr %s1019, 32
      %s1024 = sadd.s32 %s1022, %s1023
      %s1025 = smul.addr %s1024, 8
      %s1026 = scalar_lea.vmem %s4, %s1025
      // Predicated region
      $region109: #{_lambda_.1} parent=31 // pred_check
        %p1027 = pneg %p111
      $region110: #{_lambda_.1} parent=31 // pred_check_branch
        %1029 = sbr.rel (%p1027) target = $region112
      $region111: #{_lambda_.1} parent=31 // pred_region
        %s1030 = smul.u32 8, %s21
      $region112: #{_lambda_.1} parent=31 // pred_fallthru
        _
    $region32: #{_lambda_.1} parent=5 // pred_fallthru
      _
    %p1031 = scmp.le.s32.totalorder 2, %s11
    // Predicated region
    $region113: #{_lambda_.1} parent=5 // pred_check
      %p1032 = pneg %p1031
    $region114: #{_lambda_.1} parent=5 // pred_check_branch
      %1034 = sbr.rel (%p1032) target = $region116
    $region115: #{_lambda_.1} parent=5 // pred_region
      %s1035 = ssub.s32 %s11, 2
      // Predicated region
      $region117: #{_lambda_.1} parent=115 // pred_check
        %p1036 = pneg %p117
      $region118: #{_lambda_.1} parent=115 // pred_check_branch
        %1038 = sbr.rel (%p1036) target = $region120
      $region119: #{_lambda_.1} parent=115 // pred_region
        %s1039 = smul.u32 8, %s23
        %p1040 = scmp.lt.s32.totalorder %s22, 1
        %s1041 = scalar_select %p1040, %s22, 1
        %p1042 = scmp.lt.s32.totalorder %s1039, 15
        %s1043 = scalar_select %p1042, %s1039, 15
        %s1044 = smul.addr %s1043, 2
        %s1045 = smul.addr %s1041, 32
        %s1046 = sadd.s32 %s1044, %s1045
        %s1047 = smul.addr %s1046, 8
        %s1048 = scalar_lea.vmem %s4, %s1047
      $region120: #{_lambda_.1} parent=115 // pred_fallthru
        _
    $region116: #{_lambda_.1} parent=5 // pred_fallthru
      _
  $region6: #{_lambda_.1} parent=0 // loop_footer
    %s15 = sadd.s32 1, %s11
  $region7: #{_lambda_.1} parent=0 // loop_footer_branch
    %10 = sbr.rel target = $region3
  $region8: #{_lambda_.1} parent=0 // loop_exit
    _
  %1049 = vsyncmov [#allocation3]
  %s1050 = vpop.sfrf %1049
  %p1051 = scmp.eq.s32.totalorder %s1050, 0
  %p1052 = pneg %p1051
  %1054 = shalt.err (%p1052)
  %s1055 = scalar_lea.sflag [#allocation3], 1
  %1056 = vsyncmov %s1055
  %s1057 = vpop.sfrf %1056
  %p1058 = scmp.eq.s32.totalorder %s1057, 0
  %p1059 = pneg %p1058
  %1061 = shalt.err (%p1059)

</llo_original>
